<compile_context>
chip_gen: v6e
topology: v6e:2x2x1
jax: 0.10.0
libtpu: 0.0.40
codegen_flags: <defaults>
</compile_context>

<pallas_src>
import jax
import jax.numpy as jnp
from jax.experimental import pallas as pl
from jax.experimental.pallas import tpu as pltpu


def pos_emb_kernel(x_ref, freqs_ref, o_ref):
    # x_ref: (tm, 1)   freqs_ref: (1, half)   o_ref: (tm, 2*half)
    half = freqs_ref.shape[1]
    phases = x_ref[...] * freqs_ref[...]          # broadcast outer product -> (tm, half)
    o_ref[:, :half] = jnp.cos(phases).astype(o_ref.dtype)
    o_ref[:, half:] = jnp.sin(phases).astype(o_ref.dtype)


def positional_embedding(x, num_channels, max_positions=10000, endpoint=False, *, tm=512):
    """x: (N,) -> (N, num_channels), matching the PyTorch PositionalEmbedding forward."""
    assert num_channels % 2 == 0
    N = x.shape[0]
    half = num_channels // 2

    # Constant frequency table (depends only on hyperparameters, not on x).
    freqs = jnp.arange(half, dtype=jnp.float32)
    freqs = freqs / (half - (1 if endpoint else 0))
    freqs = (1.0 / max_positions) ** freqs
    freqs = freqs.astype(x.dtype).reshape(1, half)

    # Row tile: multiple of 8 (sublane), no larger than needed for N.
    tm = max(8, min(tm, ((N + 7) // 8) * 8))
    tm = (tm // 8) * 8
    n_tiles = pl.cdiv(N, tm)
    Mp = n_tiles * tm

    x2d = x.reshape(N, 1)
    if Mp != N:
        x2d = jnp.pad(x2d, ((0, Mp - N), (0, 0)))

    itemsize = jnp.dtype(x.dtype).itemsize
    out = pl.pallas_call(
        pos_emb_kernel,
        out_shape=jax.ShapeDtypeStruct((Mp, num_channels), x.dtype),
        grid_spec=pltpu.PrefetchScalarGridSpec(
            num_scalar_prefetch=0,
            grid=(n_tiles,),
            in_specs=[
                pl.BlockSpec((tm, 1), lambda i: (i, 0)),        # x rows
                pl.BlockSpec((1, half), lambda i: (0, 0)),      # freqs (constant block)
            ],
            out_specs=pl.BlockSpec((tm, num_channels), lambda i: (i, 0)),
        ),
        compiler_params=pltpu.CompilerParams(
            dimension_semantics=("parallel",),
        ),
        cost_estimate=pl.CostEstimate(
            flops=Mp * half,                                     # outer-product multiplies
            transcendentals=Mp * num_channels,                   # cos + sin
            bytes_accessed=(Mp * itemsize                        # x
                            + half * itemsize                    # freqs
                            + Mp * num_channels * itemsize),     # output
        ),
    )(x2d, freqs)

    return out[:N]


def reference(x, num_channels, max_positions=10000, endpoint=False):
    half = num_channels // 2
    freqs = jnp.arange(half, dtype=jnp.float32)
    freqs = freqs / (half - (1 if endpoint else 0))
    freqs = (1.0 / max_positions) ** freqs
    ph = jnp.outer(x, freqs.astype(x.dtype))
    return jnp.concatenate([jnp.cos(ph), jnp.sin(ph)], axis=1)


if __name__ == "__main__":
    # Module config used in point_transformer: PositionalEmbedding(num_channels=256)
    # Small test shapes: 64 positions, 256 channels (half=128 -> fully lane-dense).
    N = 64
    num_channels = 256
    max_positions = 10000
    endpoint = False

    key = jax.random.PRNGKey(0)
    x = jax.random.normal(key, (N,), dtype=jnp.float32) * 100.0  # arbitrary position values

    out = positional_embedding(x, num_channels, max_positions, endpoint)
    jax.block_until_ready(out)

    ref = reference(x, num_channels, max_positions, endpoint)
    assert out.shape == (N, num_channels)
    assert jnp.allclose(out, ref, atol=1e-5, rtol=1e-5), "mismatch vs. pure-JAX reference"

    print("KERNEL_OK")
</pallas_src>

<mosaic_0001>
module attributes {stable_mosaic.version = 11 : i64} {
  func.func @pos_emb_kernel(%arg0: i32, %arg1: memref<64x1xf32, #tpu.memory_space<vmem>>, %arg2: memref<1x128xf32, #tpu.memory_space<vmem>>, %arg3: memref<64x256xf32, #tpu.memory_space<vmem>>) attributes {dimension_semantics = [#tpu.dimension_semantics<parallel>], iteration_bounds = array<i64: 1>, scalar_prefetch = 0 : i64, scratch_operands = 0 : i64, tpu.core_type = #tpu.core_type<tc>, window_params = [{transform_indices = @transform_0, window_bounds = array<i64: 64, 1>}, {pipeline_mode = #tpu.pipeline_mode<synchronous>, transform_indices = @transform_1, window_bounds = array<i64: 1, 128>}, {transform_indices = @transform_2, window_bounds = array<i64: 64, 256>}]} {
    %c0 = arith.constant 0 : index
    %c0_0 = arith.constant 0 : index
    %0 = vector.load %arg1[%c0, %c0_0] : memref<64x1xf32, #tpu.memory_space<vmem>>, vector<64x1xf32>
    %c0_1 = arith.constant 0 : index
    %c0_2 = arith.constant 0 : index
    %1 = vector.load %arg2[%c0_1, %c0_2] : memref<1x128xf32, #tpu.memory_space<vmem>>, vector<1x128xf32>
    %2 = vector.broadcast %0 : vector<64x1xf32> to vector<64x128xf32>
    %3 = vector.broadcast %1 : vector<1x128xf32> to vector<64x128xf32>
    %4 = arith.mulf %2, %3 : vector<64x128xf32>
    %5 = math.cos %4 : vector<64x128xf32>
    %c0_3 = arith.constant 0 : index
    %c0_4 = arith.constant 0 : index
    %6 = vector.load %arg3[%c0_3, %c0_4] : memref<64x256xf32, #tpu.memory_space<vmem>>, vector<64x128xf32>
    tpu.vector_store %arg3[%c0_3, %c0_4], %5 {strides = array<i32>} : memref<64x256xf32, #tpu.memory_space<vmem>>, vector<64x128xf32>,
    %7 = math.sin %4 : vector<64x128xf32>
    %c0_5 = arith.constant 0 : index
    %c128 = arith.constant 128 : index
    %8 = vector.load %arg3[%c0_5, %c128] : memref<64x256xf32, #tpu.memory_space<vmem>>, vector<64x128xf32>
    tpu.vector_store %arg3[%c0_5, %c128], %7 {strides = array<i32>} : memref<64x256xf32, #tpu.memory_space<vmem>>, vector<64x128xf32>,
    return
  }
  func.func @transform_0(%arg0: i32) -> (i32, i32) {
    %c0_i32 = arith.constant 0 : i32
    %c0_i32_0 = arith.constant 0 : i32
    return %arg0, %c0_i32 : i32, i32
  }
  func.func @transform_1(%arg0: i32) -> (i32, i32) {
    %c0_i32 = arith.constant 0 : i32
    %c0_i32_0 = arith.constant 0 : i32
    %c0_i32_1 = arith.constant 0 : i32
    return %c0_i32, %c0_i32_0 : i32, i32
  }
  func.func @transform_2(%arg0: i32) -> (i32, i32) {
    %c0_i32 = arith.constant 0 : i32
    %c0_i32_0 = arith.constant 0 : i32
    return %arg0, %c0_i32 : i32, i32
  }
}

</mosaic_0001>

<llo_original>
// kernel: tpu_custom_call.1
$region0: #{tpu_custom_call.1}
  #allocation0 [shape = 'u32[]', space=smem, size = 0x4, offset = 0x4, fixed_abs, tag = 'smem constant byte address 0x4 - core index']
  #allocation1 [shape = 'u32[144,128]{1,0:T(1,128)}', space=vmem, size = 0x12000, scoped, tag = 'internal scratch']
  %s0 = inlined_call_operand.vmem [shape: f32[64,1], index: 0, kind: input, shape index: {}]
  %s1 = inlined_call_operand.vmem [shape: f32[1,128], index: 1, kind: input, shape index: {}]
  %s2 = inlined_call_operand.hbm [shape: f32[64,256], index: 2, kind: output, shape index: {}]
  %s3 = sld [smem:[#allocation0]]
  $region18: #{tpu_custom_call.1} parent=0
    _
  %s5 = ssub.s32 1, %s3
  %s6 = scalar_select 0, %s5, %s3
  $region1: #{tpu_custom_call.1} parent=0
    #allocation2 [shape = 'u8[65536]{0}', space=vmem, size = 0x10000, scoped, tag = 'output window, operand 0, single buffered']
    #allocation3 [shape = 's32[1]{0}', space=sflag, size = 0x4, scoped, tag = 'scoped memory for tpu_custom_call.1']
    %7 = vsyncpa [#allocation3], 0
    // Predicated region
    $region2: #{tpu_custom_call.1} parent=1 // pred_check
      _
    $region3: #{tpu_custom_call.1} parent=1 // pred_check_branch
      %9 = sbr.rel (0) target = $region5
    $region4: #{tpu_custom_call.1} parent=1 // pred_region
      _
    $region5: #{tpu_custom_call.1} parent=1 // pred_fallthru
      _
    // Predicated region
    $region6: #{tpu_custom_call.1} parent=1 // pred_check
      _
    $region7: #{tpu_custom_call.1} parent=1 // pred_check_branch
      %11 = sbr.rel (0) target = $region9
    $region8: #{tpu_custom_call.1} parent=1 // pred_region
      _
    $region9: #{tpu_custom_call.1} parent=1 // pred_fallthru
      _
    %v12 = vld [vmem:[%s0] sm:$0xff]
    %v13 = vld [vmem:[%s0 + $0x8] sm:$0xff]
    %v14 = vld [vmem:[%s0 + $0x10] sm:$0xff]
    %v15 = vld [vmem:[%s0 + $0x18] sm:$0xff]
    %v16 = vld [vmem:[%s0 + $0x20] sm:$0xff]
    %v17 = vld [vmem:[%s0 + $0x28] sm:$0xff]
    %v18 = vld [vmem:[%s0 + $0x30] sm:$0xff]
    %v19 = vld [vmem:[%s0 + $0x38] sm:$0xff]
    %v20 = vld [vmem:[%s1] sm:$0x1]
    %22 = vset.pattern.permute.xlu0 0
    %23 = vperm.xlu0 %22, %v12
    %v24 = vpop.permute.xlu0 %23
    %27 = vset.pattern.permute.xlu0 0
    %28 = vperm.xlu0 %27, %v13
    %v29 = vpop.permute.xlu0 %28
    %32 = vset.pattern.permute.xlu0 0
    %33 = vperm.xlu0 %32, %v14
    %v34 = vpop.permute.xlu0 %33
    %37 = vset.pattern.permute.xlu0 0
    %38 = vperm.xlu0 %37, %v15
    %v39 = vpop.permute.xlu0 %38
    %42 = vset.pattern.permute.xlu0 0
    %43 = vperm.xlu0 %42, %v16
    %v44 = vpop.permute.xlu0 %43
    %47 = vset.pattern.permute.xlu0 0
    %48 = vperm.xlu0 %47, %v17
    %v49 = vpop.permute.xlu0 %48
    %52 = vset.pattern.permute.xlu0 0
    %53 = vperm.xlu0 %52, %v18
    %v54 = vpop.permute.xlu0 %53
    %57 = vset.pattern.permute.xlu0 0
    %58 = vperm.xlu0 %57, %v19
    %v59 = vpop.permute.xlu0 %58
    %v62 = vlaneseq
    %v63 = vshrl.u32 %v62, 7
    %v64 = vsub.s32 0, %v63
    %v65 = vrot.slane %v20, %v64
    %v67 = vmul.f32 %v24, %v65
    %v68 = vmul.f32 %v29, %v65
    %v69 = vmul.f32 %v34, %v65
    %v70 = vmul.f32 %v39, %v65
    %v71 = vmul.f32 %v44, %v65
    %v72 = vmul.f32 %v49, %v65
    %v73 = vmul.f32 %v54, %v65
    %v74 = vmul.f32 %v59, %v65
    %v75 = vand.u32 2147483647, %v67
    %vm76 = vcmp.le.f32.partialorder %v75, 0.7853982
    %vm77 = vcmp.lt.s32.totalorder %v67, 0
    %v78 = vand.u32 %v67, 2139095040
    %v79 = vshrl.u32 %v78, 23
    %v80 = vsub.s32 %v79, 127
    %v81 = vand.u32 2147483647, %v67
    %v82 = vand.u32 %v81, 8388607
    %v83 = vor.u32 %v82, 8388608
    %v84 = vsub.s32 0, %v83
    %v85 = vadd.s32 %v80, 1
    %vm86 = vcmp.gt.s32.totalorder %v85, 0
    %v87 = vsel %vm86, %v85, 0
    %v88 = vshrl.u32 %v87, 5
    %v89 = vand.u32 %v87, 31
    %v90 = vsub.s32 32, %v89
    %v91 = vshrl.u32 683565275, %v90
    %v92 = vshll.u32 683565275, %v89
    %v93 = vshrl.u32 2475754826, %v90
    %v94 = vor.u32 %v92, %v93
    %v95 = vshll.u32 2475754826, %v89
    %v96 = vshrl.u32 2131351028, %v90
    %v97 = vor.u32 %v95, %v96
    %v98 = vshll.u32 2131351028, %v89
    %v99 = vshrl.u32 2102212464, %v90
    %v100 = vor.u32 %v98, %v99
    %v101 = vshll.u32 2102212464, %v89
    %v102 = vshrl.u32 920167782, %v90
    %v103 = vor.u32 %v101, %v102
    %v104 = vshll.u32 920167782, %v89
    %v105 = vshrl.u32 1326507024, %v90
    %v106 = vor.u32 %v104, %v105
    %vm107 = vcmp.lt.s32.totalorder %v88, 1
    %vm108 = vcmp.lt.s32.totalorder %v88, 2
    %vm109 = vcmp.lt.s32.totalorder %v88, 3
    %vm110 = vcmp.lt.s32.totalorder %v88, 4
    %v111 = vsel %vm107, %v91, %v94
    %v112 = vsel %vm110, %v100, 2102212464
    %v113 = vsel %vm109, %v97, %v112
    %v114 = vsel %vm108, %v111, %v113
    %v115 = vsel %vm107, %v94, %v97
    %v116 = vsel %vm110, %v103, 920167782
    %v117 = vsel %vm109, %v100, %v116
    %v118 = vsel %vm108, %v115, %v117
    %v119 = vsel %vm107, %v97, %v100
    %v120 = vsel %vm110, %v106, 1326507024
    %v121 = vsel %vm109, %v103, %v120
    %v122 = vsel %vm108, %v119, %v121
    %v123 = vshll.u32 %v83, 8
    %v124 = vmul.u32.u64.compose %v123, %v122
    %v125 = vextract.low.u32 %v124
    %v126 = vextract.high.u32 %v124
    %v127 = vmul.u32.u64.compose %v123, %v118
    %v128 = vextract.low.u32 %v127
    %v129 = vextract.high.u32 %v127
    %v130 = vmul.u32 %v123, %v114
    %v131 = vadd.s32 %v126, %v128
    %vm132 = vc.u32 %v126, %v128
    %v133 = vadd.s32 %v129, 1
    %v134 = vsel %vm132, %v133, %v129
    %v135 = vadd.s32 %v130, %v134
    %v136 = vadd.s32 %v135, 536870912
    %v137 = vshrl.u32 %v136, 30
    %v138 = vshll.u32 %v137, 30
    %v139 = vsub.s32 %v135, %v138
    %vm140 = vcmp.lt.s32.totalorder %v139, 0
    %v141 = vsub.s32 0, %v139
    %v142 = vsel %vm140, %v141, %v139
    %v143 = vclz %v142
    %v144 = vsub.s32 %v143, 2
    %vm145 = vcmp.gt.s32.totalorder 0, %v144
    %v146 = vsel %vm145, 0, %v144
    %v147 = vsub.s32 32, %v146
    %v148 = vshll.u32 %v139, %v146
    %v149 = vshrl.u32 %v131, %v147
    %v150 = vor.u32 %v148, %v149
    %v151 = vsub.s32 4294967266, %v146
    %v152 = vadd.s32 %v151, 127
    %v153 = vshll.u32 %v152, 23
    %v154 = vor.u32 4788187, %v153
    %v155 = vand.u32 2147483647, %v154
    %v157 = vcvt.s32.f32 %v150
    %v158 = vmul.f32 %v157, %v155
    %v159 = vxor.u32 %v158, 2147483648
    %v160 = vsel %vm77, %v159, %v158
    %v161 = vsub.s32 4, %v137
    %v162 = vsel %vm77, %v161, %v137
    %v163 = vsel %vm76, %v67, %v160
    %v164 = vsel %vm76, 0, %v162
    %v165 = vcosq.f32.pop %v163
    %v166 = vsinq.f32.pop %v163
    %vm167 = vweird.f32 %v67
    %v168 = vand.u32 %v164, 3
    %vm169 = vcmp.lt.s32.totalorder %v168, 2
    %vm170 = vcmp.eq.s32.totalorder %v168, 0
    %v171 = vxor.u32 %v166, 2147483648
    %v172 = vsel %vm170, %v165, %v171
    %vm173 = vcmp.eq.s32.totalorder %v168, 2
    %v174 = vxor.u32 %v165, 2147483648
    %v175 = vsel %vm173, %v174, %v166
    %v176 = vsel %vm169, %v172, %v175
    %v177 = vsel %vm167, nan, %v176
    %v178 = vand.u32 2147483647, %v68
    %vm179 = vcmp.le.f32.partialorder %v178, 0.7853982
    %vm180 = vcmp.lt.s32.totalorder %v68, 0
    %v181 = vand.u32 %v68, 2139095040
    %v182 = vshrl.u32 %v181, 23
    %v183 = vsub.s32 %v182, 127
    %v184 = vand.u32 2147483647, %v68
    %v185 = vand.u32 %v184, 8388607
    %v186 = vor.u32 %v185, 8388608
    %v187 = vsub.s32 0, %v186
    %v188 = vadd.s32 %v183, 1
    %vm189 = vcmp.gt.s32.totalorder %v188, 0
    %v190 = vsel %vm189, %v188, 0
    %v191 = vshrl.u32 %v190, 5
    %v192 = vand.u32 %v190, 31
    %v193 = vsub.s32 32, %v192
    %v194 = vshrl.u32 683565275, %v193
    %v195 = vshll.u32 683565275, %v192
    %v196 = vshrl.u32 2475754826, %v193
    %v197 = vor.u32 %v195, %v196
    %v198 = vshll.u32 2475754826, %v192
    %v199 = vshrl.u32 2131351028, %v193
    %v200 = vor.u32 %v198, %v199
    %v201 = vshll.u32 2131351028, %v192
    %v202 = vshrl.u32 2102212464, %v193
    %v203 = vor.u32 %v201, %v202
    %v204 = vshll.u32 2102212464, %v192
    %v205 = vshrl.u32 920167782, %v193
    %v206 = vor.u32 %v204, %v205
    %v207 = vshll.u32 920167782, %v192
    %v208 = vshrl.u32 1326507024, %v193
    %v209 = vor.u32 %v207, %v208
    %vm210 = vcmp.lt.s32.totalorder %v191, 1
    %vm211 = vcmp.lt.s32.totalorder %v191, 2
    %vm212 = vcmp.lt.s32.totalorder %v191, 3
    %vm213 = vcmp.lt.s32.totalorder %v191, 4
    %v214 = vsel %vm210, %v194, %v197
    %v215 = vsel %vm213, %v203, 2102212464
    %v216 = vsel %vm212, %v200, %v215
    %v217 = vsel %vm211, %v214, %v216
    %v218 = vsel %vm210, %v197, %v200
    %v219 = vsel %vm213, %v206, 920167782
    %v220 = vsel %vm212, %v203, %v219
    %v221 = vsel %vm211, %v218, %v220
    %v222 = vsel %vm210, %v200, %v203
    %v223 = vsel %vm213, %v209, 1326507024
    %v224 = vsel %vm212, %v206, %v223
    %v225 = vsel %vm211, %v222, %v224
    %v226 = vshll.u32 %v186, 8
    %v227 = vmul.u32.u64.compose %v226, %v225
    %v228 = vextract.low.u32 %v227
    %v229 = vextract.high.u32 %v227
    %v230 = vmul.u32.u64.compose %v226, %v221
    %v231 = vextract.low.u32 %v230
    %v232 = vextract.high.u32 %v230
    %v233 = vmul.u32 %v226, %v217
    %v234 = vadd.s32 %v229, %v231
    %vm235 = vc.u32 %v229, %v231
    %v236 = vadd.s32 %v232, 1
    %v237 = vsel %vm235, %v236, %v232
    %v238 = vadd.s32 %v233, %v237
    %v239 = vadd.s32 %v238, 536870912
    %v240 = vshrl.u32 %v239, 30
    %v241 = vshll.u32 %v240, 30
    %v242 = vsub.s32 %v238, %v241
    %vm243 = vcmp.lt.s32.totalorder %v242, 0
    %v244 = vsub.s32 0, %v242
    %v245 = vsel %vm243, %v244, %v242
    %v246 = vclz %v245
    %v247 = vsub.s32 %v246, 2
    %vm248 = vcmp.gt.s32.totalorder 0, %v247
    %v249 = vsel %vm248, 0, %v247
    %v250 = vsub.s32 32, %v249
    %v251 = vshll.u32 %v242, %v249
    %v252 = vshrl.u32 %v234, %v250
    %v253 = vor.u32 %v251, %v252
    %v254 = vsub.s32 4294967266, %v249
    %v255 = vadd.s32 %v254, 127
    %v256 = vshll.u32 %v255, 23
    %v257 = vor.u32 4788187, %v256
    %v258 = vand.u32 2147483647, %v257
    %v260 = vcvt.s32.f32 %v253
    %v261 = vmul.f32 %v260, %v258
    %v262 = vxor.u32 %v261, 2147483648
    %v263 = vsel %vm180, %v262, %v261
    %v264 = vsub.s32 4, %v240
    %v265 = vsel %vm180, %v264, %v240
    %v266 = vsel %vm179, %v68, %v263
    %v267 = vsel %vm179, 0, %v265
    %v268 = vcosq.f32.pop %v266
    %v269 = vsinq.f32.pop %v266
    %vm270 = vweird.f32 %v68
    %v271 = vand.u32 %v267, 3
    %vm272 = vcmp.lt.s32.totalorder %v271, 2
    %vm273 = vcmp.eq.s32.totalorder %v271, 0
    %v274 = vxor.u32 %v269, 2147483648
    %v275 = vsel %vm273, %v268, %v274
    %vm276 = vcmp.eq.s32.totalorder %v271, 2
    %v277 = vxor.u32 %v268, 2147483648
    %v278 = vsel %vm276, %v277, %v269
    %v279 = vsel %vm272, %v275, %v278
    %v280 = vsel %vm270, nan, %v279
    %v281 = vand.u32 2147483647, %v69
    %vm282 = vcmp.le.f32.partialorder %v281, 0.7853982
    %vm283 = vcmp.lt.s32.totalorder %v69, 0
    %v284 = vand.u32 %v69, 2139095040
    %v285 = vshrl.u32 %v284, 23
    %v286 = vsub.s32 %v285, 127
    %v287 = vand.u32 2147483647, %v69
    %v288 = vand.u32 %v287, 8388607
    %v289 = vor.u32 %v288, 8388608
    %v290 = vsub.s32 0, %v289
    %v291 = vadd.s32 %v286, 1
    %vm292 = vcmp.gt.s32.totalorder %v291, 0
    %v293 = vsel %vm292, %v291, 0
    %v294 = vshrl.u32 %v293, 5
    %v295 = vand.u32 %v293, 31
    %v296 = vsub.s32 32, %v295
    %v297 = vshrl.u32 683565275, %v296
    %v298 = vshll.u32 683565275, %v295
    %v299 = vshrl.u32 2475754826, %v296
    %v300 = vor.u32 %v298, %v299
    %v301 = vshll.u32 2475754826, %v295
    %v302 = vshrl.u32 2131351028, %v296
    %v303 = vor.u32 %v301, %v302
    %v304 = vshll.u32 2131351028, %v295
    %v305 = vshrl.u32 2102212464, %v296
    %v306 = vor.u32 %v304, %v305
    %v307 = vshll.u32 2102212464, %v295
    %v308 = vshrl.u32 920167782, %v296
    %v309 = vor.u32 %v307, %v308
    %v310 = vshll.u32 920167782, %v295
    %v311 = vshrl.u32 1326507024, %v296
    %v312 = vor.u32 %v310, %v311
    %vm313 = vcmp.lt.s32.totalorder %v294, 1
    %vm314 = vcmp.lt.s32.totalorder %v294, 2
    %vm315 = vcmp.lt.s32.totalorder %v294, 3
    %vm316 = vcmp.lt.s32.totalorder %v294, 4
    %v317 = vsel %vm313, %v297, %v300
    %v318 = vsel %vm316, %v306, 2102212464
    %v319 = vsel %vm315, %v303, %v318
    %v320 = vsel %vm314, %v317, %v319
    %v321 = vsel %vm313, %v300, %v303
    %v322 = vsel %vm316, %v309, 920167782
    %v323 = vsel %vm315, %v306, %v322
    %v324 = vsel %vm314, %v321, %v323
    %v325 = vsel %vm313, %v303, %v306
    %v326 = vsel %vm316, %v312, 1326507024
    %v327 = vsel %vm315, %v309, %v326
    %v328 = vsel %vm314, %v325, %v327
    %v329 = vshll.u32 %v289, 8
    %v330 = vmul.u32.u64.compose %v329, %v328
    %v331 = vextract.low.u32 %v330
    %v332 = vextract.high.u32 %v330
    %v333 = vmul.u32.u64.compose %v329, %v324
    %v334 = vextract.low.u32 %v333
    %v335 = vextract.high.u32 %v333
    %v336 = vmul.u32 %v329, %v320
    %v337 = vadd.s32 %v332, %v334
    %vm338 = vc.u32 %v332, %v334
    %v339 = vadd.s32 %v335, 1
    %v340 = vsel %vm338, %v339, %v335
    %v341 = vadd.s32 %v336, %v340
    %v342 = vadd.s32 %v341, 536870912
    %v343 = vshrl.u32 %v342, 30
    %v344 = vshll.u32 %v343, 30
    %v345 = vsub.s32 %v341, %v344
    %vm346 = vcmp.lt.s32.totalorder %v345, 0
    %v347 = vsub.s32 0, %v345
    %v348 = vsel %vm346, %v347, %v345
    %v349 = vclz %v348
    %v350 = vsub.s32 %v349, 2
    %vm351 = vcmp.gt.s32.totalorder 0, %v350
    %v352 = vsel %vm351, 0, %v350
    %v353 = vsub.s32 32, %v352
    %v354 = vshll.u32 %v345, %v352
    %v355 = vshrl.u32 %v337, %v353
    %v356 = vor.u32 %v354, %v355
    %v357 = vsub.s32 4294967266, %v352
    %v358 = vadd.s32 %v357, 127
    %v359 = vshll.u32 %v358, 23
    %v360 = vor.u32 4788187, %v359
    %v361 = vand.u32 2147483647, %v360
    %v363 = vcvt.s32.f32 %v356
    %v364 = vmul.f32 %v363, %v361
    %v365 = vxor.u32 %v364, 2147483648
    %v366 = vsel %vm283, %v365, %v364
    %v367 = vsub.s32 4, %v343
    %v368 = vsel %vm283, %v367, %v343
    %v369 = vsel %vm282, %v69, %v366
    %v370 = vsel %vm282, 0, %v368
    %v371 = vcosq.f32.pop %v369
    %v372 = vsinq.f32.pop %v369
    %vm373 = vweird.f32 %v69
    %v374 = vand.u32 %v370, 3
    %vm375 = vcmp.lt.s32.totalorder %v374, 2
    %vm376 = vcmp.eq.s32.totalorder %v374, 0
    %v377 = vxor.u32 %v372, 2147483648
    %v378 = vsel %vm376, %v371, %v377
    %vm379 = vcmp.eq.s32.totalorder %v374, 2
    %v380 = vxor.u32 %v371, 2147483648
    %v381 = vsel %vm379, %v380, %v372
    %v382 = vsel %vm375, %v378, %v381
    %v383 = vsel %vm373, nan, %v382
    %v384 = vand.u32 2147483647, %v70
    %vm385 = vcmp.le.f32.partialorder %v384, 0.7853982
    %vm386 = vcmp.lt.s32.totalorder %v70, 0
    %v387 = vand.u32 %v70, 2139095040
    %v388 = vshrl.u32 %v387, 23
    %v389 = vsub.s32 %v388, 127
    %v390 = vand.u32 2147483647, %v70
    %v391 = vand.u32 %v390, 8388607
    %v392 = vor.u32 %v391, 8388608
    %v393 = vsub.s32 0, %v392
    %v394 = vadd.s32 %v389, 1
    %vm395 = vcmp.gt.s32.totalorder %v394, 0
    %v396 = vsel %vm395, %v394, 0
    %v397 = vshrl.u32 %v396, 5
    %v398 = vand.u32 %v396, 31
    %v399 = vsub.s32 32, %v398
    %v400 = vshrl.u32 683565275, %v399
    %v401 = vshll.u32 683565275, %v398
    %v402 = vshrl.u32 2475754826, %v399
    %v403 = vor.u32 %v401, %v402
    %v404 = vshll.u32 2475754826, %v398
    %v405 = vshrl.u32 2131351028, %v399
    %v406 = vor.u32 %v404, %v405
    %v407 = vshll.u32 2131351028, %v398
    %v408 = vshrl.u32 2102212464, %v399
    %v409 = vor.u32 %v407, %v408
    %v410 = vshll.u32 2102212464, %v398
    %v411 = vshrl.u32 920167782, %v399
    %v412 = vor.u32 %v410, %v411
    %v413 = vshll.u32 920167782, %v398
    %v414 = vshrl.u32 1326507024, %v399
    %v415 = vor.u32 %v413, %v414
    %vm416 = vcmp.lt.s32.totalorder %v397, 1
    %vm417 = vcmp.lt.s32.totalorder %v397, 2
    %vm418 = vcmp.lt.s32.totalorder %v397, 3
    %vm419 = vcmp.lt.s32.totalorder %v397, 4
    %v420 = vsel %vm416, %v400, %v403
    %v421 = vsel %vm419, %v409, 2102212464
    %v422 = vsel %vm418, %v406, %v421
    %v423 = vsel %vm417, %v420, %v422
    %v424 = vsel %vm416, %v403, %v406
    %v425 = vsel %vm419, %v412, 920167782
    %v426 = vsel %vm418, %v409, %v425
    %v427 = vsel %vm417, %v424, %v426
    %v428 = vsel %vm416, %v406, %v409
    %v429 = vsel %vm419, %v415, 1326507024
    %v430 = vsel %vm418, %v412, %v429
    %v431 = vsel %vm417, %v428, %v430
    %v432 = vshll.u32 %v392, 8
    %v433 = vmul.u32.u64.compose %v432, %v431
    %v434 = vextract.low.u32 %v433
    %v435 = vextract.high.u32 %v433
    %v436 = vmul.u32.u64.compose %v432, %v427
    %v437 = vextract.low.u32 %v436
    %v438 = vextract.high.u32 %v436
    %v439 = vmul.u32 %v432, %v423
    %v440 = vadd.s32 %v435, %v437
    %vm441 = vc.u32 %v435, %v437
    %v442 = vadd.s32 %v438, 1
    %v443 = vsel %vm441, %v442, %v438
    %v444 = vadd.s32 %v439, %v443
    %v445 = vadd.s32 %v444, 536870912
    %v446 = vshrl.u32 %v445, 30
    %v447 = vshll.u32 %v446, 30
    %v448 = vsub.s32 %v444, %v447
    %vm449 = vcmp.lt.s32.totalorder %v448, 0
    %v450 = vsub.s32 0, %v448
    %v451 = vsel %vm449, %v450, %v448
    %v452 = vclz %v451
    %v453 = vsub.s32 %v452, 2
    %vm454 = vcmp.gt.s32.totalorder 0, %v453
    %v455 = vsel %vm454, 0, %v453
    %v456 = vsub.s32 32, %v455
    %v457 = vshll.u32 %v448, %v455
    %v458 = vshrl.u32 %v440, %v456
    %v459 = vor.u32 %v457, %v458
    %v460 = vsub.s32 4294967266, %v455
    %v461 = vadd.s32 %v460, 127
    %v462 = vshll.u32 %v461, 23
    %v463 = vor.u32 4788187, %v462
    %v464 = vand.u32 2147483647, %v463
    %v466 = vcvt.s32.f32 %v459
    %v467 = vmul.f32 %v466, %v464
    %v468 = vxor.u32 %v467, 2147483648
    %v469 = vsel %vm386, %v468, %v467
    %v470 = vsub.s32 4, %v446
    %v471 = vsel %vm386, %v470, %v446
    %v472 = vsel %vm385, %v70, %v469
    %v473 = vsel %vm385, 0, %v471
    %v474 = vcosq.f32.pop %v472
    %v475 = vsinq.f32.pop %v472
    %vm476 = vweird.f32 %v70
    %v477 = vand.u32 %v473, 3
    %vm478 = vcmp.lt.s32.totalorder %v477, 2
    %vm479 = vcmp.eq.s32.totalorder %v477, 0
    %v480 = vxor.u32 %v475, 2147483648
    %v481 = vsel %vm479, %v474, %v480
    %vm482 = vcmp.eq.s32.totalorder %v477, 2
    %v483 = vxor.u32 %v474, 2147483648
    %v484 = vsel %vm482, %v483, %v475
    %v485 = vsel %vm478, %v481, %v484
    %v486 = vsel %vm476, nan, %v485
    %v487 = vand.u32 2147483647, %v71
    %vm488 = vcmp.le.f32.partialorder %v487, 0.7853982
    %vm489 = vcmp.lt.s32.totalorder %v71, 0
    %v490 = vand.u32 %v71, 2139095040
    %v491 = vshrl.u32 %v490, 23
    %v492 = vsub.s32 %v491, 127
    %v493 = vand.u32 2147483647, %v71
    %v494 = vand.u32 %v493, 8388607
    %v495 = vor.u32 %v494, 8388608
    %v496 = vsub.s32 0, %v495
    %v497 = vadd.s32 %v492, 1
    %vm498 = vcmp.gt.s32.totalorder %v497, 0
    %v499 = vsel %vm498, %v497, 0
    %v500 = vshrl.u32 %v499, 5
    %v501 = vand.u32 %v499, 31
    %v502 = vsub.s32 32, %v501
    %v503 = vshrl.u32 683565275, %v502
    %v504 = vshll.u32 683565275, %v501
    %v505 = vshrl.u32 2475754826, %v502
    %v506 = vor.u32 %v504, %v505
    %v507 = vshll.u32 2475754826, %v501
    %v508 = vshrl.u32 2131351028, %v502
    %v509 = vor.u32 %v507, %v508
    %v510 = vshll.u32 2131351028, %v501
    %v511 = vshrl.u32 2102212464, %v502
    %v512 = vor.u32 %v510, %v511
    %v513 = vshll.u32 2102212464, %v501
    %v514 = vshrl.u32 920167782, %v502
    %v515 = vor.u32 %v513, %v514
    %v516 = vshll.u32 920167782, %v501
    %v517 = vshrl.u32 1326507024, %v502
    %v518 = vor.u32 %v516, %v517
    %vm519 = vcmp.lt.s32.totalorder %v500, 1
    %vm520 = vcmp.lt.s32.totalorder %v500, 2
    %vm521 = vcmp.lt.s32.totalorder %v500, 3
    %vm522 = vcmp.lt.s32.totalorder %v500, 4
    %v523 = vsel %vm519, %v503, %v506
    %v524 = vsel %vm522, %v512, 2102212464
    %v525 = vsel %vm521, %v509, %v524
    %v526 = vsel %vm520, %v523, %v525
    %v527 = vsel %vm519, %v506, %v509
    %v528 = vsel %vm522, %v515, 920167782
    %v529 = vsel %vm521, %v512, %v528
    %v530 = vsel %vm520, %v527, %v529
    %v531 = vsel %vm519, %v509, %v512
    %v532 = vsel %vm522, %v518, 1326507024
    %v533 = vsel %vm521, %v515, %v532
    %v534 = vsel %vm520, %v531, %v533
    %v535 = vshll.u32 %v495, 8
    %v536 = vmul.u32.u64.compose %v535, %v534
    %v537 = vextract.low.u32 %v536
    %v538 = vextract.high.u32 %v536
    %v539 = vmul.u32.u64.compose %v535, %v530
    %v540 = vextract.low.u32 %v539
    %v541 = vextract.high.u32 %v539
    %v542 = vmul.u32 %v535, %v526
    %v543 = vadd.s32 %v538, %v540
    %vm544 = vc.u32 %v538, %v540
    %v545 = vadd.s32 %v541, 1
    %v546 = vsel %vm544, %v545, %v541
    %v547 = vadd.s32 %v542, %v546
    %v548 = vadd.s32 %v547, 536870912
    %v549 = vshrl.u32 %v548, 30
    %v550 = vshll.u32 %v549, 30
    %v551 = vsub.s32 %v547, %v550
    %vm552 = vcmp.lt.s32.totalorder %v551, 0
    %v553 = vsub.s32 0, %v551
    %v554 = vsel %vm552, %v553, %v551
    %v555 = vclz %v554
    %v556 = vsub.s32 %v555, 2
    %vm557 = vcmp.gt.s32.totalorder 0, %v556
    %v558 = vsel %vm557, 0, %v556
    %v559 = vsub.s32 32, %v558
    %v560 = vshll.u32 %v551, %v558
    %v561 = vshrl.u32 %v543, %v559
    %v562 = vor.u32 %v560, %v561
    %v563 = vsub.s32 4294967266, %v558
    %v564 = vadd.s32 %v563, 127
    %v565 = vshll.u32 %v564, 23
    %v566 = vor.u32 4788187, %v565
    %v567 = vand.u32 2147483647, %v566
    %v569 = vcvt.s32.f32 %v562
    %v570 = vmul.f32 %v569, %v567
    %v571 = vxor.u32 %v570, 2147483648
    %v572 = vsel %vm489, %v571, %v570
    %v573 = vsub.s32 4, %v549
    %v574 = vsel %vm489, %v573, %v549
    %v575 = vsel %vm488, %v71, %v572
    %v576 = vsel %vm488, 0, %v574
    %v577 = vcosq.f32.pop %v575
    %v578 = vsinq.f32.pop %v575
    %vm579 = vweird.f32 %v71
    %v580 = vand.u32 %v576, 3
    %vm581 = vcmp.lt.s32.totalorder %v580, 2
    %vm582 = vcmp.eq.s32.totalorder %v580, 0
    %v583 = vxor.u32 %v578, 2147483648
    %v584 = vsel %vm582, %v577, %v583
    %vm585 = vcmp.eq.s32.totalorder %v580, 2
    %v586 = vxor.u32 %v577, 2147483648
    %v587 = vsel %vm585, %v586, %v578
    %v588 = vsel %vm581, %v584, %v587
    %v589 = vsel %vm579, nan, %v588
    %v590 = vand.u32 2147483647, %v72
    %vm591 = vcmp.le.f32.partialorder %v590, 0.7853982
    %vm592 = vcmp.lt.s32.totalorder %v72, 0
    %v593 = vand.u32 %v72, 2139095040
    %v594 = vshrl.u32 %v593, 23
    %v595 = vsub.s32 %v594, 127
    %v596 = vand.u32 2147483647, %v72
    %v597 = vand.u32 %v596, 8388607
    %v598 = vor.u32 %v597, 8388608
    %v599 = vsub.s32 0, %v598
    %v600 = vadd.s32 %v595, 1
    %vm601 = vcmp.gt.s32.totalorder %v600, 0
    %v602 = vsel %vm601, %v600, 0
    %v603 = vshrl.u32 %v602, 5
    %v604 = vand.u32 %v602, 31
    %v605 = vsub.s32 32, %v604
    %v606 = vshrl.u32 683565275, %v605
    %v607 = vshll.u32 683565275, %v604
    %v608 = vshrl.u32 2475754826, %v605
    %v609 = vor.u32 %v607, %v608
    %v610 = vshll.u32 2475754826, %v604
    %v611 = vshrl.u32 2131351028, %v605
    %v612 = vor.u32 %v610, %v611
    %v613 = vshll.u32 2131351028, %v604
    %v614 = vshrl.u32 2102212464, %v605
    %v615 = vor.u32 %v613, %v614
    %v616 = vshll.u32 2102212464, %v604
    %v617 = vshrl.u32 920167782, %v605
    %v618 = vor.u32 %v616, %v617
    %v619 = vshll.u32 920167782, %v604
    %v620 = vshrl.u32 1326507024, %v605
    %v621 = vor.u32 %v619, %v620
    %vm622 = vcmp.lt.s32.totalorder %v603, 1
    %vm623 = vcmp.lt.s32.totalorder %v603, 2
    %vm624 = vcmp.lt.s32.totalorder %v603, 3
    %vm625 = vcmp.lt.s32.totalorder %v603, 4
    %v626 = vsel %vm622, %v606, %v609
    %v627 = vsel %vm625, %v615, 2102212464
    %v628 = vsel %vm624, %v612, %v627
    %v629 = vsel %vm623, %v626, %v628
    %v630 = vsel %vm622, %v609, %v612
    %v631 = vsel %vm625, %v618, 920167782
    %v632 = vsel %vm624, %v615, %v631
    %v633 = vsel %vm623, %v630, %v632
    %v634 = vsel %vm622, %v612, %v615
    %v635 = vsel %vm625, %v621, 1326507024
    %v636 = vsel %vm624, %v618, %v635
    %v637 = vsel %vm623, %v634, %v636
    %v638 = vshll.u32 %v598, 8
    %v639 = vmul.u32.u64.compose %v638, %v637
    %v640 = vextract.low.u32 %v639
    %v641 = vextract.high.u32 %v639
    %v642 = vmul.u32.u64.compose %v638, %v633
    %v643 = vextract.low.u32 %v642
    %v644 = vextract.high.u32 %v642
    %v645 = vmul.u32 %v638, %v629
    %v646 = vadd.s32 %v641, %v643
    %vm647 = vc.u32 %v641, %v643
    %v648 = vadd.s32 %v644, 1
    %v649 = vsel %vm647, %v648, %v644
    %v650 = vadd.s32 %v645, %v649
    %v651 = vadd.s32 %v650, 536870912
    %v652 = vshrl.u32 %v651, 30
    %v653 = vshll.u32 %v652, 30
    %v654 = vsub.s32 %v650, %v653
    %vm655 = vcmp.lt.s32.totalorder %v654, 0
    %v656 = vsub.s32 0, %v654
    %v657 = vsel %vm655, %v656, %v654
    %v658 = vclz %v657
    %v659 = vsub.s32 %v658, 2
    %vm660 = vcmp.gt.s32.totalorder 0, %v659
    %v661 = vsel %vm660, 0, %v659
    %v662 = vsub.s32 32, %v661
    %v663 = vshll.u32 %v654, %v661
    %v664 = vshrl.u32 %v646, %v662
    %v665 = vor.u32 %v663, %v664
    %v666 = vsub.s32 4294967266, %v661
    %v667 = vadd.s32 %v666, 127
    %v668 = vshll.u32 %v667, 23
    %v669 = vor.u32 4788187, %v668
    %v670 = vand.u32 2147483647, %v669
    %v672 = vcvt.s32.f32 %v665
    %v673 = vmul.f32 %v672, %v670
    %v674 = vxor.u32 %v673, 2147483648
    %v675 = vsel %vm592, %v674, %v673
    %v676 = vsub.s32 4, %v652
    %v677 = vsel %vm592, %v676, %v652
    %v678 = vsel %vm591, %v72, %v675
    %v679 = vsel %vm591, 0, %v677
    %v680 = vcosq.f32.pop %v678
    %v681 = vsinq.f32.pop %v678
    %vm682 = vweird.f32 %v72
    %v683 = vand.u32 %v679, 3
    %vm684 = vcmp.lt.s32.totalorder %v683, 2
    %vm685 = vcmp.eq.s32.totalorder %v683, 0
    %v686 = vxor.u32 %v681, 2147483648
    %v687 = vsel %vm685, %v680, %v686
    %vm688 = vcmp.eq.s32.totalorder %v683, 2
    %v689 = vxor.u32 %v680, 2147483648
    %v690 = vsel %vm688, %v689, %v681
    %v691 = vsel %vm684, %v687, %v690
    %v692 = vsel %vm682, nan, %v691
    %v693 = vand.u32 2147483647, %v73
    %vm694 = vcmp.le.f32.partialorder %v693, 0.7853982
    %vm695 = vcmp.lt.s32.totalorder %v73, 0
    %v696 = vand.u32 %v73, 2139095040
    %v697 = vshrl.u32 %v696, 23
    %v698 = vsub.s32 %v697, 127
    %v699 = vand.u32 2147483647, %v73
    %v700 = vand.u32 %v699, 8388607
    %v701 = vor.u32 %v700, 8388608
    %v702 = vsub.s32 0, %v701
    %v703 = vadd.s32 %v698, 1
    %vm704 = vcmp.gt.s32.totalorder %v703, 0
    %v705 = vsel %vm704, %v703, 0
    %v706 = vshrl.u32 %v705, 5
    %v707 = vand.u32 %v705, 31
    %v708 = vsub.s32 32, %v707
    %v709 = vshrl.u32 683565275, %v708
    %v710 = vshll.u32 683565275, %v707
    %v711 = vshrl.u32 2475754826, %v708
    %v712 = vor.u32 %v710, %v711
    %v713 = vshll.u32 2475754826, %v707
    %v714 = vshrl.u32 2131351028, %v708
    %v715 = vor.u32 %v713, %v714
    %v716 = vshll.u32 2131351028, %v707
    %v717 = vshrl.u32 2102212464, %v708
    %v718 = vor.u32 %v716, %v717
    %v719 = vshll.u32 2102212464, %v707
    %v720 = vshrl.u32 920167782, %v708
    %v721 = vor.u32 %v719, %v720
    %v722 = vshll.u32 920167782, %v707
    %v723 = vshrl.u32 1326507024, %v708
    %v724 = vor.u32 %v722, %v723
    %vm725 = vcmp.lt.s32.totalorder %v706, 1
    %vm726 = vcmp.lt.s32.totalorder %v706, 2
    %vm727 = vcmp.lt.s32.totalorder %v706, 3
    %vm728 = vcmp.lt.s32.totalorder %v706, 4
    %v729 = vsel %vm725, %v709, %v712
    %v730 = vsel %vm728, %v718, 2102212464
    %v731 = vsel %vm727, %v715, %v730
    %v732 = vsel %vm726, %v729, %v731
    %v733 = vsel %vm725, %v712, %v715
    %v734 = vsel %vm728, %v721, 920167782
    %v735 = vsel %vm727, %v718, %v734
    %v736 = vsel %vm726, %v733, %v735
    %v737 = vsel %vm725, %v715, %v718
    %v738 = vsel %vm728, %v724, 1326507024
    %v739 = vsel %vm727, %v721, %v738
    %v740 = vsel %vm726, %v737, %v739
    %v741 = vshll.u32 %v701, 8
    %v742 = vmul.u32.u64.compose %v741, %v740
    %v743 = vextract.low.u32 %v742
    %v744 = vextract.high.u32 %v742
    %v745 = vmul.u32.u64.compose %v741, %v736
    %v746 = vextract.low.u32 %v745
    %v747 = vextract.high.u32 %v745
    %v748 = vmul.u32 %v741, %v732
    %v749 = vadd.s32 %v744, %v746
    %vm750 = vc.u32 %v744, %v746
    %v751 = vadd.s32 %v747, 1
    %v752 = vsel %vm750, %v751, %v747
    %v753 = vadd.s32 %v748, %v752
    %v754 = vadd.s32 %v753, 536870912
    %v755 = vshrl.u32 %v754, 30
    %v756 = vshll.u32 %v755, 30
    %v757 = vsub.s32 %v753, %v756
    %vm758 = vcmp.lt.s32.totalorder %v757, 0
    %v759 = vsub.s32 0, %v757
    %v760 = vsel %vm758, %v759, %v757
    %v761 = vclz %v760
    %v762 = vsub.s32 %v761, 2
    %vm763 = vcmp.gt.s32.totalorder 0, %v762
    %v764 = vsel %vm763, 0, %v762
    %v765 = vsub.s32 32, %v764
    %v766 = vshll.u32 %v757, %v764
    %v767 = vshrl.u32 %v749, %v765
    %v768 = vor.u32 %v766, %v767
    %v769 = vsub.s32 4294967266, %v764
    %v770 = vadd.s32 %v769, 127
    %v771 = vshll.u32 %v770, 23
    %v772 = vor.u32 4788187, %v771
    %v773 = vand.u32 2147483647, %v772
    %v775 = vcvt.s32.f32 %v768
    %v776 = vmul.f32 %v775, %v773
    %v777 = vxor.u32 %v776, 2147483648
    %v778 = vsel %vm695, %v777, %v776
    %v779 = vsub.s32 4, %v755
    %v780 = vsel %vm695, %v779, %v755
    %v781 = vsel %vm694, %v73, %v778
    %v782 = vsel %vm694, 0, %v780
    %v783 = vcosq.f32.pop %v781
    %v784 = vsinq.f32.pop %v781
    %vm785 = vweird.f32 %v73
    %v786 = vand.u32 %v782, 3
    %vm787 = vcmp.lt.s32.totalorder %v786, 2
    %vm788 = vcmp.eq.s32.totalorder %v786, 0
    %v789 = vxor.u32 %v784, 2147483648
    %v790 = vsel %vm788, %v783, %v789
    %vm791 = vcmp.eq.s32.totalorder %v786, 2
    %v792 = vxor.u32 %v783, 2147483648
    %v793 = vsel %vm791, %v792, %v784
    %v794 = vsel %vm787, %v790, %v793
    %v795 = vsel %vm785, nan, %v794
    %v796 = vand.u32 2147483647, %v74
    %vm797 = vcmp.le.f32.partialorder %v796, 0.7853982
    %vm798 = vcmp.lt.s32.totalorder %v74, 0
    %v799 = vand.u32 %v74, 2139095040
    %v800 = vshrl.u32 %v799, 23
    %v801 = vsub.s32 %v800, 127
    %v802 = vand.u32 2147483647, %v74
    %v803 = vand.u32 %v802, 8388607
    %v804 = vor.u32 %v803, 8388608
    %v805 = vsub.s32 0, %v804
    %v806 = vadd.s32 %v801, 1
    %vm807 = vcmp.gt.s32.totalorder %v806, 0
    %v808 = vsel %vm807, %v806, 0
    %v809 = vshrl.u32 %v808, 5
    %v810 = vand.u32 %v808, 31
    %v811 = vsub.s32 32, %v810
    %v812 = vshrl.u32 683565275, %v811
    %v813 = vshll.u32 683565275, %v810
    %v814 = vshrl.u32 2475754826, %v811
    %v815 = vor.u32 %v813, %v814
    %v816 = vshll.u32 2475754826, %v810
    %v817 = vshrl.u32 2131351028, %v811
    %v818 = vor.u32 %v816, %v817
    %v819 = vshll.u32 2131351028, %v810
    %v820 = vshrl.u32 2102212464, %v811
    %v821 = vor.u32 %v819, %v820
    %v822 = vshll.u32 2102212464, %v810
    %v823 = vshrl.u32 920167782, %v811
    %v824 = vor.u32 %v822, %v823
    %v825 = vshll.u32 920167782, %v810
    %v826 = vshrl.u32 1326507024, %v811
    %v827 = vor.u32 %v825, %v826
    %vm828 = vcmp.lt.s32.totalorder %v809, 1
    %vm829 = vcmp.lt.s32.totalorder %v809, 2
    %vm830 = vcmp.lt.s32.totalorder %v809, 3
    %vm831 = vcmp.lt.s32.totalorder %v809, 4
    %v832 = vsel %vm828, %v812, %v815
    %v833 = vsel %vm831, %v821, 2102212464
    %v834 = vsel %vm830, %v818, %v833
    %v835 = vsel %vm829, %v832, %v834
    %v836 = vsel %vm828, %v815, %v818
    %v837 = vsel %vm831, %v824, 920167782
    %v838 = vsel %vm830, %v821, %v837
    %v839 = vsel %vm829, %v836, %v838
    %v840 = vsel %vm828, %v818, %v821
    %v841 = vsel %vm831, %v827, 1326507024
    %v842 = vsel %vm830, %v824, %v841
    %v843 = vsel %vm829, %v840, %v842
    %v844 = vshll.u32 %v804, 8
    %v845 = vmul.u32.u64.compose %v844, %v843
    %v846 = vextract.low.u32 %v845
    %v847 = vextract.high.u32 %v845
    %v848 = vmul.u32.u64.compose %v844, %v839
    %v849 = vextract.low.u32 %v848
    %v850 = vextract.high.u32 %v848
    %v851 = vmul.u32 %v844, %v835
    %v852 = vadd.s32 %v847, %v849
    %vm853 = vc.u32 %v847, %v849
    %v854 = vadd.s32 %v850, 1
    %v855 = vsel %vm853, %v854, %v850
    %v856 = vadd.s32 %v851, %v855
    %v857 = vadd.s32 %v856, 536870912
    %v858 = vshrl.u32 %v857, 30
    %v859 = vshll.u32 %v858, 30
    %v860 = vsub.s32 %v856, %v859
    %vm861 = vcmp.lt.s32.totalorder %v860, 0
    %v862 = vsub.s32 0, %v860
    %v863 = vsel %vm861, %v862, %v860
    %v864 = vclz %v863
    %v865 = vsub.s32 %v864, 2
    %vm866 = vcmp.gt.s32.totalorder 0, %v865
    %v867 = vsel %vm866, 0, %v865
    %v868 = vsub.s32 32, %v867
    %v869 = vshll.u32 %v860, %v867
    %v870 = vshrl.u32 %v852, %v868
    %v871 = vor.u32 %v869, %v870
    %v872 = vsub.s32 4294967266, %v867
    %v873 = vadd.s32 %v872, 127
    %v874 = vshll.u32 %v873, 23
    %v875 = vor.u32 4788187, %v874
    %v876 = vand.u32 2147483647, %v875
    %v878 = vcvt.s32.f32 %v871
    %v879 = vmul.f32 %v878, %v876
    %v880 = vxor.u32 %v879, 2147483648
    %v881 = vsel %vm798, %v880, %v879
    %v882 = vsub.s32 4, %v858
    %v883 = vsel %vm798, %v882, %v858
    %v884 = vsel %vm797, %v74, %v881
    %v885 = vsel %vm797, 0, %v883
    %v886 = vcosq.f32.pop %v884
    %v887 = vsinq.f32.pop %v884
    %vm888 = vweird.f32 %v74
    %v889 = vand.u32 %v885, 3
    %vm890 = vcmp.lt.s32.totalorder %v889, 2
    %vm891 = vcmp.eq.s32.totalorder %v889, 0
    %v892 = vxor.u32 %v887, 2147483648
    %v893 = vsel %vm891, %v886, %v892
    %vm894 = vcmp.eq.s32.totalorder %v889, 2
    %v895 = vxor.u32 %v886, 2147483648
    %v896 = vsel %vm894, %v895, %v887
    %v897 = vsel %vm890, %v893, %v896
    %v898 = vsel %vm888, nan, %v897
    %899 = vst [vmem:[#allocation2] sm:$0xff] %v177
    %900 = vst [vmem:[#allocation2 + $0x10] sm:$0xff] %v280
    %901 = vst [vmem:[#allocation2 + $0x20] sm:$0xff] %v383
    %902 = vst [vmem:[#allocation2 + $0x30] sm:$0xff] %v486
    %903 = vst [vmem:[#allocation2 + $0x40] sm:$0xff] %v589
    %904 = vst [vmem:[#allocation2 + $0x50] sm:$0xff] %v692
    %905 = vst [vmem:[#allocation2 + $0x60] sm:$0xff] %v795
    %906 = vst [vmem:[#allocation2 + $0x70] sm:$0xff] %v898
    %v907 = vand.u32 2147483647, %v67
    %vm908 = vcmp.le.f32.partialorder %v907, 0.7853982
    %vm909 = vcmp.lt.s32.totalorder %v67, 0
    %v910 = vand.u32 %v67, 2139095040
    %v911 = vshrl.u32 %v910, 23
    %v912 = vsub.s32 %v911, 127
    %v913 = vand.u32 2147483647, %v67
    %v914 = vand.u32 %v913, 8388607
    %v915 = vor.u32 %v914, 8388608
    %v916 = vsub.s32 0, %v915
    %v917 = vadd.s32 %v912, 1
    %vm918 = vcmp.gt.s32.totalorder %v917, 0
    %v919 = vsel %vm918, %v917, 0
    %v920 = vshrl.u32 %v919, 5
    %v921 = vand.u32 %v919, 31
    %v922 = vsub.s32 32, %v921
    %v923 = vshrl.u32 683565275, %v922
    %v924 = vshll.u32 683565275, %v921
    %v925 = vshrl.u32 2475754826, %v922
    %v926 = vor.u32 %v924, %v925
    %v927 = vshll.u32 2475754826, %v921
    %v928 = vshrl.u32 2131351028, %v922
    %v929 = vor.u32 %v927, %v928
    %v930 = vshll.u32 2131351028, %v921
    %v931 = vshrl.u32 2102212464, %v922
    %v932 = vor.u32 %v930, %v931
    %v933 = vshll.u32 2102212464, %v921
    %v934 = vshrl.u32 920167782, %v922
    %v935 = vor.u32 %v933, %v934
    %v936 = vshll.u32 920167782, %v921
    %v937 = vshrl.u32 1326507024, %v922
    %v938 = vor.u32 %v936, %v937
    %vm939 = vcmp.lt.s32.totalorder %v920, 1
    %vm940 = vcmp.lt.s32.totalorder %v920, 2
    %vm941 = vcmp.lt.s32.totalorder %v920, 3
    %vm942 = vcmp.lt.s32.totalorder %v920, 4
    %v943 = vsel %vm939, %v923, %v926
    %v944 = vsel %vm942, %v932, 2102212464
    %v945 = vsel %vm941, %v929, %v944
    %v946 = vsel %vm940, %v943, %v945
    %v947 = vsel %vm939, %v926, %v929
    %v948 = vsel %vm942, %v935, 920167782
    %v949 = vsel %vm941, %v932, %v948
    %v950 = vsel %vm940, %v947, %v949
    %v951 = vsel %vm939, %v929, %v932
    %v952 = vsel %vm942, %v938, 1326507024
    %v953 = vsel %vm941, %v935, %v952
    %v954 = vsel %vm940, %v951, %v953
    %v955 = vshll.u32 %v915, 8
    %v956 = vmul.u32.u64.compose %v955, %v954
    %v957 = vextract.low.u32 %v956
    %v958 = vextract.high.u32 %v956
    %v959 = vmul.u32.u64.compose %v955, %v950
    %v960 = vextract.low.u32 %v959
    %v961 = vextract.high.u32 %v959
    %v962 = vmul.u32 %v955, %v946
    %v963 = vadd.s32 %v958, %v960
    %vm964 = vc.u32 %v958, %v960
    %v965 = vadd.s32 %v961, 1
    %v966 = vsel %vm964, %v965, %v961
    %v967 = vadd.s32 %v962, %v966
    %v968 = vadd.s32 %v967, 536870912
    %v969 = vshrl.u32 %v968, 30
    %v970 = vshll.u32 %v969, 30
    %v971 = vsub.s32 %v967, %v970
    %vm972 = vcmp.lt.s32.totalorder %v971, 0
    %v973 = vsub.s32 0, %v971
    %v974 = vsel %vm972, %v973, %v971
    %v975 = vclz %v974
    %v976 = vsub.s32 %v975, 2
    %vm977 = vcmp.gt.s32.totalorder 0, %v976
    %v978 = vsel %vm977, 0, %v976
    %v979 = vsub.s32 32, %v978
    %v980 = vshll.u32 %v971, %v978
    %v981 = vshrl.u32 %v963, %v979
    %v982 = vor.u32 %v980, %v981
    %v983 = vsub.s32 4294967266, %v978
    %v984 = vadd.s32 %v983, 127
    %v985 = vshll.u32 %v984, 23
    %v986 = vor.u32 4788187, %v985
    %v987 = vand.u32 2147483647, %v986
    %v989 = vcvt.s32.f32 %v982
    %v990 = vmul.f32 %v989, %v987
    %v991 = vxor.u32 %v990, 2147483648
    %v992 = vsel %vm909, %v991, %v990
    %v993 = vsub.s32 4, %v969
    %v994 = vsel %vm909, %v993, %v969
    %v995 = vsel %vm908, %v67, %v992
    %v996 = vsel %vm908, 0, %v994
    %v997 = vcosq.f32.pop %v995
    %v998 = vsinq.f32.pop %v995
    %vm999 = vweird.f32 %v67
    %v1000 = vadd.s32 %v996, 3
    %v1001 = vand.u32 %v1000, 3
    %vm1002 = vcmp.lt.s32.totalorder %v1001, 2
    %vm1003 = vcmp.eq.s32.totalorder %v1001, 0
    %v1004 = vxor.u32 %v998, 2147483648
    %v1005 = vsel %vm1003, %v997, %v1004
    %vm1006 = vcmp.eq.s32.totalorder %v1001, 2
    %v1007 = vxor.u32 %v997, 2147483648
    %v1008 = vsel %vm1006, %v1007, %v998
    %v1009 = vsel %vm1002, %v1005, %v1008
    %v1010 = vsel %vm999, nan, %v1009
    %v1011 = vand.u32 2147483647, %v68
    %vm1012 = vcmp.le.f32.partialorder %v1011, 0.7853982
    %vm1013 = vcmp.lt.s32.totalorder %v68, 0
    %v1014 = vand.u32 %v68, 2139095040
    %v1015 = vshrl.u32 %v1014, 23
    %v1016 = vsub.s32 %v1015, 127
    %v1017 = vand.u32 2147483647, %v68
    %v1018 = vand.u32 %v1017, 8388607
    %v1019 = vor.u32 %v1018, 8388608
    %v1020 = vsub.s32 0, %v1019
    %v1021 = vadd.s32 %v1016, 1
    %vm1022 = vcmp.gt.s32.totalorder %v1021, 0
    %v1023 = vsel %vm1022, %v1021, 0
    %v1024 = vshrl.u32 %v1023, 5
    %v1025 = vand.u32 %v1023, 31
    %v1026 = vsub.s32 32, %v1025
    %v1027 = vshrl.u32 683565275, %v1026
    %v1028 = vshll.u32 683565275, %v1025
    %v1029 = vshrl.u32 2475754826, %v1026
    %v1030 = vor.u32 %v1028, %v1029
    %v1031 = vshll.u32 2475754826, %v1025
    %v1032 = vshrl.u32 2131351028, %v1026
    %v1033 = vor.u32 %v1031, %v1032
    %v1034 = vshll.u32 2131351028, %v1025
    %v1035 = vshrl.u32 2102212464, %v1026
    %v1036 = vor.u32 %v1034, %v1035
    %v1037 = vshll.u32 2102212464, %v1025
    %v1038 = vshrl.u32 920167782, %v1026
    %v1039 = vor.u32 %v1037, %v1038
    %v1040 = vshll.u32 920167782, %v1025
    %v1041 = vshrl.u32 1326507024, %v1026
    %v1042 = vor.u32 %v1040, %v1041
    %vm1043 = vcmp.lt.s32.totalorder %v1024, 1
    %vm1044 = vcmp.lt.s32.totalorder %v1024, 2
    %vm1045 = vcmp.lt.s32.totalorder %v1024, 3
    %vm1046 = vcmp.lt.s32.totalorder %v1024, 4
    %v1047 = vsel %vm1043, %v1027, %v1030
    %v1048 = vsel %vm1046, %v1036, 2102212464
    %v1049 = vsel %vm1045, %v1033, %v1048
    %v1050 = vsel %vm1044, %v1047, %v1049
    %v1051 = vsel %vm1043, %v1030, %v1033
    %v1052 = vsel %vm1046, %v1039, 920167782
    %v1053 = vsel %vm1045, %v1036, %v1052
    %v1054 = vsel %vm1044, %v1051, %v1053
    %v1055 = vsel %vm1043, %v1033, %v1036
    %v1056 = vsel %vm1046, %v1042, 1326507024
    %v1057 = vsel %vm1045, %v1039, %v1056
    %v1058 = vsel %vm1044, %v1055, %v1057
    %v1059 = vshll.u32 %v1019, 8
    %v1060 = vmul.u32.u64.compose %v1059, %v1058
    %v1061 = vextract.low.u32 %v1060
    %v1062 = vextract.high.u32 %v1060
    %v1063 = vmul.u32.u64.compose %v1059, %v1054
    %v1064 = vextract.low.u32 %v1063
    %v1065 = vextract.high.u32 %v1063
    %v1066 = vmul.u32 %v1059, %v1050
    %v1067 = vadd.s32 %v1062, %v1064
    %vm1068 = vc.u32 %v1062, %v1064
    %v1069 = vadd.s32 %v1065, 1
    %v1070 = vsel %vm1068, %v1069, %v1065
    %v1071 = vadd.s32 %v1066, %v1070
    %v1072 = vadd.s32 %v1071, 536870912
    %v1073 = vshrl.u32 %v1072, 30
    %v1074 = vshll.u32 %v1073, 30
    %v1075 = vsub.s32 %v1071, %v1074
    %vm1076 = vcmp.lt.s32.totalorder %v1075, 0
    %v1077 = vsub.s32 0, %v1075
    %v1078 = vsel %vm1076, %v1077, %v1075
    %v1079 = vclz %v1078
    %v1080 = vsub.s32 %v1079, 2
    %vm1081 = vcmp.gt.s32.totalorder 0, %v1080
    %v1082 = vsel %vm1081, 0, %v1080
    %v1083 = vsub.s32 32, %v1082
    %v1084 = vshll.u32 %v1075, %v1082
    %v1085 = vshrl.u32 %v1067, %v1083
    %v1086 = vor.u32 %v1084, %v1085
    %v1087 = vsub.s32 4294967266, %v1082
    %v1088 = vadd.s32 %v1087, 127
    %v1089 = vshll.u32 %v1088, 23
    %v1090 = vor.u32 4788187, %v1089
    %v1091 = vand.u32 2147483647, %v1090
    %v1093 = vcvt.s32.f32 %v1086
    %v1094 = vmul.f32 %v1093, %v1091
    %v1095 = vxor.u32 %v1094, 2147483648
    %v1096 = vsel %vm1013, %v1095, %v1094
    %v1097 = vsub.s32 4, %v1073
    %v1098 = vsel %vm1013, %v1097, %v1073
    %v1099 = vsel %vm1012, %v68, %v1096
    %v1100 = vsel %vm1012, 0, %v1098
    %v1101 = vcosq.f32.pop %v1099
    %v1102 = vsinq.f32.pop %v1099
    %vm1103 = vweird.f32 %v68
    %v1104 = vadd.s32 %v1100, 3
    %v1105 = vand.u32 %v1104, 3
    %vm1106 = vcmp.lt.s32.totalorder %v1105, 2
    %vm1107 = vcmp.eq.s32.totalorder %v1105, 0
    %v1108 = vxor.u32 %v1102, 2147483648
    %v1109 = vsel %vm1107, %v1101, %v1108
    %vm1110 = vcmp.eq.s32.totalorder %v1105, 2
    %v1111 = vxor.u32 %v1101, 2147483648
    %v1112 = vsel %vm1110, %v1111, %v1102
    %v1113 = vsel %vm1106, %v1109, %v1112
    %v1114 = vsel %vm1103, nan, %v1113
    %v1115 = vand.u32 2147483647, %v69
    %vm1116 = vcmp.le.f32.partialorder %v1115, 0.7853982
    %vm1117 = vcmp.lt.s32.totalorder %v69, 0
    %v1118 = vand.u32 %v69, 2139095040
    %v1119 = vshrl.u32 %v1118, 23
    %v1120 = vsub.s32 %v1119, 127
    %v1121 = vand.u32 2147483647, %v69
    %v1122 = vand.u32 %v1121, 8388607
    %v1123 = vor.u32 %v1122, 8388608
    %v1124 = vsub.s32 0, %v1123
    %v1125 = vadd.s32 %v1120, 1
    %vm1126 = vcmp.gt.s32.totalorder %v1125, 0
    %v1127 = vsel %vm1126, %v1125, 0
    %v1128 = vshrl.u32 %v1127, 5
    %v1129 = vand.u32 %v1127, 31
    %v1130 = vsub.s32 32, %v1129
    %v1131 = vshrl.u32 683565275, %v1130
    %v1132 = vshll.u32 683565275, %v1129
    %v1133 = vshrl.u32 2475754826, %v1130
    %v1134 = vor.u32 %v1132, %v1133
    %v1135 = vshll.u32 2475754826, %v1129
    %v1136 = vshrl.u32 2131351028, %v1130
    %v1137 = vor.u32 %v1135, %v1136
    %v1138 = vshll.u32 2131351028, %v1129
    %v1139 = vshrl.u32 2102212464, %v1130
    %v1140 = vor.u32 %v1138, %v1139
    %v1141 = vshll.u32 2102212464, %v1129
    %v1142 = vshrl.u32 920167782, %v1130
    %v1143 = vor.u32 %v1141, %v1142
    %v1144 = vshll.u32 920167782, %v1129
    %v1145 = vshrl.u32 1326507024, %v1130
    %v1146 = vor.u32 %v1144, %v1145
    %vm1147 = vcmp.lt.s32.totalorder %v1128, 1
    %vm1148 = vcmp.lt.s32.totalorder %v1128, 2
    %vm1149 = vcmp.lt.s32.totalorder %v1128, 3
    %vm1150 = vcmp.lt.s32.totalorder %v1128, 4
    %v1151 = vsel %vm1147, %v1131, %v1134
    %v1152 = vsel %vm1150, %v1140, 2102212464
    %v1153 = vsel %vm1149, %v1137, %v1152
    %v1154 = vsel %vm1148, %v1151, %v1153
    %v1155 = vsel %vm1147, %v1134, %v1137
    %v1156 = vsel %vm1150, %v1143, 920167782
    %v1157 = vsel %vm1149, %v1140, %v1156
    %v1158 = vsel %vm1148, %v1155, %v1157
    %v1159 = vsel %vm1147, %v1137, %v1140
    %v1160 = vsel %vm1150, %v1146, 1326507024
    %v1161 = vsel %vm1149, %v1143, %v1160
    %v1162 = vsel %vm1148, %v1159, %v1161
    %v1163 = vshll.u32 %v1123, 8
    %v1164 = vmul.u32.u64.compose %v1163, %v1162
    %v1165 = vextract.low.u32 %v1164
    %v1166 = vextract.high.u32 %v1164
    %v1167 = vmul.u32.u64.compose %v1163, %v1158
    %v1168 = vextract.low.u32 %v1167
    %v1169 = vextract.high.u32 %v1167
    %v1170 = vmul.u32 %v1163, %v1154
    %v1171 = vadd.s32 %v1166, %v1168
    %vm1172 = vc.u32 %v1166, %v1168
    %v1173 = vadd.s32 %v1169, 1
    %v1174 = vsel %vm1172, %v1173, %v1169
    %v1175 = vadd.s32 %v1170, %v1174
    %v1176 = vadd.s32 %v1175, 536870912
    %v1177 = vshrl.u32 %v1176, 30
    %v1178 = vshll.u32 %v1177, 30
    %v1179 = vsub.s32 %v1175, %v1178
    %vm1180 = vcmp.lt.s32.totalorder %v1179, 0
    %v1181 = vsub.s32 0, %v1179
    %v1182 = vsel %vm1180, %v1181, %v1179
    %v1183 = vclz %v1182
    %v1184 = vsub.s32 %v1183, 2
    %vm1185 = vcmp.gt.s32.totalorder 0, %v1184
    %v1186 = vsel %vm1185, 0, %v1184
    %v1187 = vsub.s32 32, %v1186
    %v1188 = vshll.u32 %v1179, %v1186
    %v1189 = vshrl.u32 %v1171, %v1187
    %v1190 = vor.u32 %v1188, %v1189
    %v1191 = vsub.s32 4294967266, %v1186
    %v1192 = vadd.s32 %v1191, 127
    %v1193 = vshll.u32 %v1192, 23
    %v1194 = vor.u32 4788187, %v1193
    %v1195 = vand.u32 2147483647, %v1194
    %v1197 = vcvt.s32.f32 %v1190
    %v1198 = vmul.f32 %v1197, %v1195
    %v1199 = vxor.u32 %v1198, 2147483648
    %v1200 = vsel %vm1117, %v1199, %v1198
    %v1201 = vsub.s32 4, %v1177
    %v1202 = vsel %vm1117, %v1201, %v1177
    %v1203 = vsel %vm1116, %v69, %v1200
    %v1204 = vsel %vm1116, 0, %v1202
    %v1205 = vcosq.f32.pop %v1203
    %v1206 = vsinq.f32.pop %v1203
    %vm1207 = vweird.f32 %v69
    %v1208 = vadd.s32 %v1204, 3
    %v1209 = vand.u32 %v1208, 3
    %vm1210 = vcmp.lt.s32.totalorder %v1209, 2
    %vm1211 = vcmp.eq.s32.totalorder %v1209, 0
    %v1212 = vxor.u32 %v1206, 2147483648
    %v1213 = vsel %vm1211, %v1205, %v1212
    %vm1214 = vcmp.eq.s32.totalorder %v1209, 2
    %v1215 = vxor.u32 %v1205, 2147483648
    %v1216 = vsel %vm1214, %v1215, %v1206
    %v1217 = vsel %vm1210, %v1213, %v1216
    %v1218 = vsel %vm1207, nan, %v1217
    %v1219 = vand.u32 2147483647, %v70
    %vm1220 = vcmp.le.f32.partialorder %v1219, 0.7853982
    %vm1221 = vcmp.lt.s32.totalorder %v70, 0
    %v1222 = vand.u32 %v70, 2139095040
    %v1223 = vshrl.u32 %v1222, 23
    %v1224 = vsub.s32 %v1223, 127
    %v1225 = vand.u32 2147483647, %v70
    %v1226 = vand.u32 %v1225, 8388607
    %v1227 = vor.u32 %v1226, 8388608
    %v1228 = vsub.s32 0, %v1227
    %v1229 = vadd.s32 %v1224, 1
    %vm1230 = vcmp.gt.s32.totalorder %v1229, 0
    %v1231 = vsel %vm1230, %v1229, 0
    %v1232 = vshrl.u32 %v1231, 5
    %v1233 = vand.u32 %v1231, 31
    %v1234 = vsub.s32 32, %v1233
    %v1235 = vshrl.u32 683565275, %v1234
    %v1236 = vshll.u32 683565275, %v1233
    %v1237 = vshrl.u32 2475754826, %v1234
    %v1238 = vor.u32 %v1236, %v1237
    %v1239 = vshll.u32 2475754826, %v1233
    %v1240 = vshrl.u32 2131351028, %v1234
    %v1241 = vor.u32 %v1239, %v1240
    %v1242 = vshll.u32 2131351028, %v1233
    %v1243 = vshrl.u32 2102212464, %v1234
    %v1244 = vor.u32 %v1242, %v1243
    %v1245 = vshll.u32 2102212464, %v1233
    %v1246 = vshrl.u32 920167782, %v1234
    %v1247 = vor.u32 %v1245, %v1246
    %v1248 = vshll.u32 920167782, %v1233
    %v1249 = vshrl.u32 1326507024, %v1234
    %v1250 = vor.u32 %v1248, %v1249
    %vm1251 = vcmp.lt.s32.totalorder %v1232, 1
    %vm1252 = vcmp.lt.s32.totalorder %v1232, 2
    %vm1253 = vcmp.lt.s32.totalorder %v1232, 3
    %vm1254 = vcmp.lt.s32.totalorder %v1232, 4
    %v1255 = vsel %vm1251, %v1235, %v1238
    %v1256 = vsel %vm1254, %v1244, 2102212464
    %v1257 = vsel %vm1253, %v1241, %v1256
    %v1258 = vsel %vm1252, %v1255, %v1257
    %v1259 = vsel %vm1251, %v1238, %v1241
    %v1260 = vsel %vm1254, %v1247, 920167782
    %v1261 = vsel %vm1253, %v1244, %v1260
    %v1262 = vsel %vm1252, %v1259, %v1261
    %v1263 = vsel %vm1251, %v1241, %v1244
    %v1264 = vsel %vm1254, %v1250, 1326507024
    %v1265 = vsel %vm1253, %v1247, %v1264
    %v1266 = vsel %vm1252, %v1263, %v1265
    %v1267 = vshll.u32 %v1227, 8
    %v1268 = vmul.u32.u64.compose %v1267, %v1266
    %v1269 = vextract.low.u32 %v1268
    %v1270 = vextract.high.u32 %v1268
    %v1271 = vmul.u32.u64.compose %v1267, %v1262
    %v1272 = vextract.low.u32 %v1271
    %v1273 = vextract.high.u32 %v1271
    %v1274 = vmul.u32 %v1267, %v1258
    %v1275 = vadd.s32 %v1270, %v1272
    %vm1276 = vc.u32 %v1270, %v1272
    %v1277 = vadd.s32 %v1273, 1
    %v1278 = vsel %vm1276, %v1277, %v1273
    %v1279 = vadd.s32 %v1274, %v1278
    %v1280 = vadd.s32 %v1279, 536870912
    %v1281 = vshrl.u32 %v1280, 30
    %v1282 = vshll.u32 %v1281, 30
    %v1283 = vsub.s32 %v1279, %v1282
    %vm1284 = vcmp.lt.s32.totalorder %v1283, 0
    %v1285 = vsub.s32 0, %v1283
    %v1286 = vsel %vm1284, %v1285, %v1283
    %v1287 = vclz %v1286
    %v1288 = vsub.s32 %v1287, 2
    %vm1289 = vcmp.gt.s32.totalorder 0, %v1288
    %v1290 = vsel %vm1289, 0, %v1288
    %v1291 = vsub.s32 32, %v1290
    %v1292 = vshll.u32 %v1283, %v1290
    %v1293 = vshrl.u32 %v1275, %v1291
    %v1294 = vor.u32 %v1292, %v1293
    %v1295 = vsub.s32 4294967266, %v1290
    %v1296 = vadd.s32 %v1295, 127
    %v1297 = vshll.u32 %v1296, 23
    %v1298 = vor.u32 4788187, %v1297
    %v1299 = vand.u32 2147483647, %v1298
    %v1301 = vcvt.s32.f32 %v1294
    %v1302 = vmul.f32 %v1301, %v1299
    %v1303 = vxor.u32 %v1302, 2147483648
    %v1304 = vsel %vm1221, %v1303, %v1302
    %v1305 = vsub.s32 4, %v1281
    %v1306 = vsel %vm1221, %v1305, %v1281
    %v1307 = vsel %vm1220, %v70, %v1304
    %v1308 = vsel %vm1220, 0, %v1306
    %v1309 = vcosq.f32.pop %v1307
    %v1310 = vsinq.f32.pop %v1307
    %vm1311 = vweird.f32 %v70
    %v1312 = vadd.s32 %v1308, 3
    %v1313 = vand.u32 %v1312, 3
    %vm1314 = vcmp.lt.s32.totalorder %v1313, 2
    %vm1315 = vcmp.eq.s32.totalorder %v1313, 0
    %v1316 = vxor.u32 %v1310, 2147483648
    %v1317 = vsel %vm1315, %v1309, %v1316
    %vm1318 = vcmp.eq.s32.totalorder %v1313, 2
    %v1319 = vxor.u32 %v1309, 2147483648
    %v1320 = vsel %vm1318, %v1319, %v1310
    %v1321 = vsel %vm1314, %v1317, %v1320
    %v1322 = vsel %vm1311, nan, %v1321
    %v1323 = vand.u32 2147483647, %v71
    %vm1324 = vcmp.le.f32.partialorder %v1323, 0.7853982
    %vm1325 = vcmp.lt.s32.totalorder %v71, 0
    %v1326 = vand.u32 %v71, 2139095040
    %v1327 = vshrl.u32 %v1326, 23
    %v1328 = vsub.s32 %v1327, 127
    %v1329 = vand.u32 2147483647, %v71
    %v1330 = vand.u32 %v1329, 8388607
    %v1331 = vor.u32 %v1330, 8388608
    %v1332 = vsub.s32 0, %v1331
    %v1333 = vadd.s32 %v1328, 1
    %vm1334 = vcmp.gt.s32.totalorder %v1333, 0
    %v1335 = vsel %vm1334, %v1333, 0
    %v1336 = vshrl.u32 %v1335, 5
    %v1337 = vand.u32 %v1335, 31
    %v1338 = vsub.s32 32, %v1337
    %v1339 = vshrl.u32 683565275, %v1338
    %v1340 = vshll.u32 683565275, %v1337
    %v1341 = vshrl.u32 2475754826, %v1338
    %v1342 = vor.u32 %v1340, %v1341
    %v1343 = vshll.u32 2475754826, %v1337
    %v1344 = vshrl.u32 2131351028, %v1338
    %v1345 = vor.u32 %v1343, %v1344
    %v1346 = vshll.u32 2131351028, %v1337
    %v1347 = vshrl.u32 2102212464, %v1338
    %v1348 = vor.u32 %v1346, %v1347
    %v1349 = vshll.u32 2102212464, %v1337
    %v1350 = vshrl.u32 920167782, %v1338
    %v1351 = vor.u32 %v1349, %v1350
    %v1352 = vshll.u32 920167782, %v1337
    %v1353 = vshrl.u32 1326507024, %v1338
    %v1354 = vor.u32 %v1352, %v1353
    %vm1355 = vcmp.lt.s32.totalorder %v1336, 1
    %vm1356 = vcmp.lt.s32.totalorder %v1336, 2
    %vm1357 = vcmp.lt.s32.totalorder %v1336, 3
    %vm1358 = vcmp.lt.s32.totalorder %v1336, 4
    %v1359 = vsel %vm1355, %v1339, %v1342
    %v1360 = vsel %vm1358, %v1348, 2102212464
    %v1361 = vsel %vm1357, %v1345, %v1360
    %v1362 = vsel %vm1356, %v1359, %v1361
    %v1363 = vsel %vm1355, %v1342, %v1345
    %v1364 = vsel %vm1358, %v1351, 920167782
    %v1365 = vsel %vm1357, %v1348, %v1364
    %v1366 = vsel %vm1356, %v1363, %v1365
    %v1367 = vsel %vm1355, %v1345, %v1348
    %v1368 = vsel %vm1358, %v1354, 1326507024
    %v1369 = vsel %vm1357, %v1351, %v1368
    %v1370 = vsel %vm1356, %v1367, %v1369
    %v1371 = vshll.u32 %v1331, 8
    %v1372 = vmul.u32.u64.compose %v1371, %v1370
    %v1373 = vextract.low.u32 %v1372
    %v1374 = vextract.high.u32 %v1372
    %v1375 = vmul.u32.u64.compose %v1371, %v1366
    %v1376 = vextract.low.u32 %v1375
    %v1377 = vextract.high.u32 %v1375
    %v1378 = vmul.u32 %v1371, %v1362
    %v1379 = vadd.s32 %v1374, %v1376
    %vm1380 = vc.u32 %v1374, %v1376
    %v1381 = vadd.s32 %v1377, 1
    %v1382 = vsel %vm1380, %v1381, %v1377
    %v1383 = vadd.s32 %v1378, %v1382
    %v1384 = vadd.s32 %v1383, 536870912
    %v1385 = vshrl.u32 %v1384, 30
    %v1386 = vshll.u32 %v1385, 30
    %v1387 = vsub.s32 %v1383, %v1386
    %vm1388 = vcmp.lt.s32.totalorder %v1387, 0
    %v1389 = vsub.s32 0, %v1387
    %v1390 = vsel %vm1388, %v1389, %v1387
    %v1391 = vclz %v1390
    %v1392 = vsub.s32 %v1391, 2
    %vm1393 = vcmp.gt.s32.totalorder 0, %v1392
    %v1394 = vsel %vm1393, 0, %v1392
    %v1395 = vsub.s32 32, %v1394
    %v1396 = vshll.u32 %v1387, %v1394
    %v1397 = vshrl.u32 %v1379, %v1395
    %v1398 = vor.u32 %v1396, %v1397
    %v1399 = vsub.s32 4294967266, %v1394
    %v1400 = vadd.s32 %v1399, 127
    %v1401 = vshll.u32 %v1400, 23
    %v1402 = vor.u32 4788187, %v1401
    %v1403 = vand.u32 2147483647, %v1402
    %v1405 = vcvt.s32.f32 %v1398
    %v1406 = vmul.f32 %v1405, %v1403
    %v1407 = vxor.u32 %v1406, 2147483648
    %v1408 = vsel %vm1325, %v1407, %v1406
    %v1409 = vsub.s32 4, %v1385
    %v1410 = vsel %vm1325, %v1409, %v1385
    %v1411 = vsel %vm1324, %v71, %v1408
    %v1412 = vsel %vm1324, 0, %v1410
    %v1413 = vcosq.f32.pop %v1411
    %v1414 = vsinq.f32.pop %v1411
    %vm1415 = vweird.f32 %v71
    %v1416 = vadd.s32 %v1412, 3
    %v1417 = vand.u32 %v1416, 3
    %vm1418 = vcmp.lt.s32.totalorder %v1417, 2
    %vm1419 = vcmp.eq.s32.totalorder %v1417, 0
    %v1420 = vxor.u32 %v1414, 2147483648
    %v1421 = vsel %vm1419, %v1413, %v1420
    %vm1422 = vcmp.eq.s32.totalorder %v1417, 2
    %v1423 = vxor.u32 %v1413, 2147483648
    %v1424 = vsel %vm1422, %v1423, %v1414
    %v1425 = vsel %vm1418, %v1421, %v1424
    %v1426 = vsel %vm1415, nan, %v1425
    %v1427 = vand.u32 2147483647, %v72
    %vm1428 = vcmp.le.f32.partialorder %v1427, 0.7853982
    %vm1429 = vcmp.lt.s32.totalorder %v72, 0
    %v1430 = vand.u32 %v72, 2139095040
    %v1431 = vshrl.u32 %v1430, 23
    %v1432 = vsub.s32 %v1431, 127
    %v1433 = vand.u32 2147483647, %v72
    %v1434 = vand.u32 %v1433, 8388607
    %v1435 = vor.u32 %v1434, 8388608
    %v1436 = vsub.s32 0, %v1435
    %v1437 = vadd.s32 %v1432, 1
    %vm1438 = vcmp.gt.s32.totalorder %v1437, 0
    %v1439 = vsel %vm1438, %v1437, 0
    %v1440 = vshrl.u32 %v1439, 5
    %v1441 = vand.u32 %v1439, 31
    %v1442 = vsub.s32 32, %v1441
    %v1443 = vshrl.u32 683565275, %v1442
    %v1444 = vshll.u32 683565275, %v1441
    %v1445 = vshrl.u32 2475754826, %v1442
    %v1446 = vor.u32 %v1444, %v1445
    %v1447 = vshll.u32 2475754826, %v1441
    %v1448 = vshrl.u32 2131351028, %v1442
    %v1449 = vor.u32 %v1447, %v1448
    %v1450 = vshll.u32 2131351028, %v1441
    %v1451 = vshrl.u32 2102212464, %v1442
    %v1452 = vor.u32 %v1450, %v1451
    %v1453 = vshll.u32 2102212464, %v1441
    %v1454 = vshrl.u32 920167782, %v1442
    %v1455 = vor.u32 %v1453, %v1454
    %v1456 = vshll.u32 920167782, %v1441
    %v1457 = vshrl.u32 1326507024, %v1442
    %v1458 = vor.u32 %v1456, %v1457
    %vm1459 = vcmp.lt.s32.totalorder %v1440, 1
    %vm1460 = vcmp.lt.s32.totalorder %v1440, 2
    %vm1461 = vcmp.lt.s32.totalorder %v1440, 3
    %vm1462 = vcmp.lt.s32.totalorder %v1440, 4
    %v1463 = vsel %vm1459, %v1443, %v1446
    %v1464 = vsel %vm1462, %v1452, 2102212464
    %v1465 = vsel %vm1461, %v1449, %v1464
    %v1466 = vsel %vm1460, %v1463, %v1465
    %v1467 = vsel %vm1459, %v1446, %v1449
    %v1468 = vsel %vm1462, %v1455, 920167782
    %v1469 = vsel %vm1461, %v1452, %v1468
    %v1470 = vsel %vm1460, %v1467, %v1469
    %v1471 = vsel %vm1459, %v1449, %v1452
    %v1472 = vsel %vm1462, %v1458, 1326507024
    %v1473 = vsel %vm1461, %v1455, %v1472
    %v1474 = vsel %vm1460, %v1471, %v1473
    %v1475 = vshll.u32 %v1435, 8
    %v1476 = vmul.u32.u64.compose %v1475, %v1474
    %v1477 = vextract.low.u32 %v1476
    %v1478 = vextract.high.u32 %v1476
    %v1479 = vmul.u32.u64.compose %v1475, %v1470
    %v1480 = vextract.low.u32 %v1479
    %v1481 = vextract.high.u32 %v1479
    %v1482 = vmul.u32 %v1475, %v1466
    %v1483 = vadd.s32 %v1478, %v1480
    %vm1484 = vc.u32 %v1478, %v1480
    %v1485 = vadd.s32 %v1481, 1
    %v1486 = vsel %vm1484, %v1485, %v1481
    %v1487 = vadd.s32 %v1482, %v1486
    %v1488 = vadd.s32 %v1487, 536870912
    %v1489 = vshrl.u32 %v1488, 30
    %v1490 = vshll.u32 %v1489, 30
    %v1491 = vsub.s32 %v1487, %v1490
    %vm1492 = vcmp.lt.s32.totalorder %v1491, 0
    %v1493 = vsub.s32 0, %v1491
    %v1494 = vsel %vm1492, %v1493, %v1491
    %v1495 = vclz %v1494
    %v1496 = vsub.s32 %v1495, 2
    %vm1497 = vcmp.gt.s32.totalorder 0, %v1496
    %v1498 = vsel %vm1497, 0, %v1496
    %v1499 = vsub.s32 32, %v1498
    %v1500 = vshll.u32 %v1491, %v1498
    %v1501 = vshrl.u32 %v1483, %v1499
    %v1502 = vor.u32 %v1500, %v1501
    %v1503 = vsub.s32 4294967266, %v1498
    %v1504 = vadd.s32 %v1503, 127
    %v1505 = vshll.u32 %v1504, 23
    %v1506 = vor.u32 4788187, %v1505
    %v1507 = vand.u32 2147483647, %v1506
    %v1509 = vcvt.s32.f32 %v1502
    %v1510 = vmul.f32 %v1509, %v1507
    %v1511 = vxor.u32 %v1510, 2147483648
    %v1512 = vsel %vm1429, %v1511, %v1510
    %v1513 = vsub.s32 4, %v1489
    %v1514 = vsel %vm1429, %v1513, %v1489
    %v1515 = vsel %vm1428, %v72, %v1512
    %v1516 = vsel %vm1428, 0, %v1514
    %v1517 = vcosq.f32.pop %v1515
    %v1518 = vsinq.f32.pop %v1515
    %vm1519 = vweird.f32 %v72
    %v1520 = vadd.s32 %v1516, 3
    %v1521 = vand.u32 %v1520, 3
    %vm1522 = vcmp.lt.s32.totalorder %v1521, 2
    %vm1523 = vcmp.eq.s32.totalorder %v1521, 0
    %v1524 = vxor.u32 %v1518, 2147483648
    %v1525 = vsel %vm1523, %v1517, %v1524
    %vm1526 = vcmp.eq.s32.totalorder %v1521, 2
    %v1527 = vxor.u32 %v1517, 2147483648
    %v1528 = vsel %vm1526, %v1527, %v1518
    %v1529 = vsel %vm1522, %v1525, %v1528
    %v1530 = vsel %vm1519, nan, %v1529
    %v1531 = vand.u32 2147483647, %v73
    %vm1532 = vcmp.le.f32.partialorder %v1531, 0.7853982
    %vm1533 = vcmp.lt.s32.totalorder %v73, 0
    %v1534 = vand.u32 %v73, 2139095040
    %v1535 = vshrl.u32 %v1534, 23
    %v1536 = vsub.s32 %v1535, 127
    %v1537 = vand.u32 2147483647, %v73
    %v1538 = vand.u32 %v1537, 8388607
    %v1539 = vor.u32 %v1538, 8388608
    %v1540 = vsub.s32 0, %v1539
    %v1541 = vadd.s32 %v1536, 1
    %vm1542 = vcmp.gt.s32.totalorder %v1541, 0
    %v1543 = vsel %vm1542, %v1541, 0
    %v1544 = vshrl.u32 %v1543, 5
    %v1545 = vand.u32 %v1543, 31
    %v1546 = vsub.s32 32, %v1545
    %v1547 = vshrl.u32 683565275, %v1546
    %v1548 = vshll.u32 683565275, %v1545
    %v1549 = vshrl.u32 2475754826, %v1546
    %v1550 = vor.u32 %v1548, %v1549
    %v1551 = vshll.u32 2475754826, %v1545
    %v1552 = vshrl.u32 2131351028, %v1546
    %v1553 = vor.u32 %v1551, %v1552
    %v1554 = vshll.u32 2131351028, %v1545
    %v1555 = vshrl.u32 2102212464, %v1546
    %v1556 = vor.u32 %v1554, %v1555
    %v1557 = vshll.u32 2102212464, %v1545
    %v1558 = vshrl.u32 920167782, %v1546
    %v1559 = vor.u32 %v1557, %v1558
    %v1560 = vshll.u32 920167782, %v1545
    %v1561 = vshrl.u32 1326507024, %v1546
    %v1562 = vor.u32 %v1560, %v1561
    %vm1563 = vcmp.lt.s32.totalorder %v1544, 1
    %vm1564 = vcmp.lt.s32.totalorder %v1544, 2
    %vm1565 = vcmp.lt.s32.totalorder %v1544, 3
    %vm1566 = vcmp.lt.s32.totalorder %v1544, 4
    %v1567 = vsel %vm1563, %v1547, %v1550
    %v1568 = vsel %vm1566, %v1556, 2102212464
    %v1569 = vsel %vm1565, %v1553, %v1568
    %v1570 = vsel %vm1564, %v1567, %v1569
    %v1571 = vsel %vm1563, %v1550, %v1553
    %v1572 = vsel %vm1566, %v1559, 920167782
    %v1573 = vsel %vm1565, %v1556, %v1572
    %v1574 = vsel %vm1564, %v1571, %v1573
    %v1575 = vsel %vm1563, %v1553, %v1556
    %v1576 = vsel %vm1566, %v1562, 1326507024
    %v1577 = vsel %vm1565, %v1559, %v1576
    %v1578 = vsel %vm1564, %v1575, %v1577
    %v1579 = vshll.u32 %v1539, 8
    %v1580 = vmul.u32.u64.compose %v1579, %v1578
    %v1581 = vextract.low.u32 %v1580
    %v1582 = vextract.high.u32 %v1580
    %v1583 = vmul.u32.u64.compose %v1579, %v1574
    %v1584 = vextract.low.u32 %v1583
    %v1585 = vextract.high.u32 %v1583
    %v1586 = vmul.u32 %v1579, %v1570
    %v1587 = vadd.s32 %v1582, %v1584
    %vm1588 = vc.u32 %v1582, %v1584
    %v1589 = vadd.s32 %v1585, 1
    %v1590 = vsel %vm1588, %v1589, %v1585
    %v1591 = vadd.s32 %v1586, %v1590
    %v1592 = vadd.s32 %v1591, 536870912
    %v1593 = vshrl.u32 %v1592, 30
    %v1594 = vshll.u32 %v1593, 30
    %v1595 = vsub.s32 %v1591, %v1594
    %vm1596 = vcmp.lt.s32.totalorder %v1595, 0
    %v1597 = vsub.s32 0, %v1595
    %v1598 = vsel %vm1596, %v1597, %v1595
    %v1599 = vclz %v1598
    %v1600 = vsub.s32 %v1599, 2
    %vm1601 = vcmp.gt.s32.totalorder 0, %v1600
    %v1602 = vsel %vm1601, 0, %v1600
    %v1603 = vsub.s32 32, %v1602
    %v1604 = vshll.u32 %v1595, %v1602
    %v1605 = vshrl.u32 %v1587, %v1603
    %v1606 = vor.u32 %v1604, %v1605
    %v1607 = vsub.s32 4294967266, %v1602
    %v1608 = vadd.s32 %v1607, 127
    %v1609 = vshll.u32 %v1608, 23
    %v1610 = vor.u32 4788187, %v1609
    %v1611 = vand.u32 2147483647, %v1610
    %v1613 = vcvt.s32.f32 %v1606
    %v1614 = vmul.f32 %v1613, %v1611
    %v1615 = vxor.u32 %v1614, 2147483648
    %v1616 = vsel %vm1533, %v1615, %v1614
    %v1617 = vsub.s32 4, %v1593
    %v1618 = vsel %vm1533, %v1617, %v1593
    %v1619 = vsel %vm1532, %v73, %v1616
    %v1620 = vsel %vm1532, 0, %v1618
    %v1621 = vcosq.f32.pop %v1619
    %v1622 = vsinq.f32.pop %v1619
    %vm1623 = vweird.f32 %v73
    %v1624 = vadd.s32 %v1620, 3
    %v1625 = vand.u32 %v1624, 3
    %vm1626 = vcmp.lt.s32.totalorder %v1625, 2
    %vm1627 = vcmp.eq.s32.totalorder %v1625, 0
    %v1628 = vxor.u32 %v1622, 2147483648
    %v1629 = vsel %vm1627, %v1621, %v1628
    %vm1630 = vcmp.eq.s32.totalorder %v1625, 2
    %v1631 = vxor.u32 %v1621, 2147483648
    %v1632 = vsel %vm1630, %v1631, %v1622
    %v1633 = vsel %vm1626, %v1629, %v1632
    %v1634 = vsel %vm1623, nan, %v1633
    %v1635 = vand.u32 2147483647, %v74
    %vm1636 = vcmp.le.f32.partialorder %v1635, 0.7853982
    %vm1637 = vcmp.lt.s32.totalorder %v74, 0
    %v1638 = vand.u32 %v74, 2139095040
    %v1639 = vshrl.u32 %v1638, 23
    %v1640 = vsub.s32 %v1639, 127
    %v1641 = vand.u32 2147483647, %v74
    %v1642 = vand.u32 %v1641, 8388607
    %v1643 = vor.u32 %v1642, 8388608
    %v1644 = vsub.s32 0, %v1643
    %v1645 = vadd.s32 %v1640, 1
    %vm1646 = vcmp.gt.s32.totalorder %v1645, 0
    %v1647 = vsel %vm1646, %v1645, 0
    %v1648 = vshrl.u32 %v1647, 5
    %v1649 = vand.u32 %v1647, 31
    %v1650 = vsub.s32 32, %v1649
    %v1651 = vshrl.u32 683565275, %v1650
    %v1652 = vshll.u32 683565275, %v1649
    %v1653 = vshrl.u32 2475754826, %v1650
    %v1654 = vor.u32 %v1652, %v1653
    %v1655 = vshll.u32 2475754826, %v1649
    %v1656 = vshrl.u32 2131351028, %v1650
    %v1657 = vor.u32 %v1655, %v1656
    %v1658 = vshll.u32 2131351028, %v1649
    %v1659 = vshrl.u32 2102212464, %v1650
    %v1660 = vor.u32 %v1658, %v1659
    %v1661 = vshll.u32 2102212464, %v1649
    %v1662 = vshrl.u32 920167782, %v1650
    %v1663 = vor.u32 %v1661, %v1662
    %v1664 = vshll.u32 920167782, %v1649
    %v1665 = vshrl.u32 1326507024, %v1650
    %v1666 = vor.u32 %v1664, %v1665
    %vm1667 = vcmp.lt.s32.totalorder %v1648, 1
    %vm1668 = vcmp.lt.s32.totalorder %v1648, 2
    %vm1669 = vcmp.lt.s32.totalorder %v1648, 3
    %vm1670 = vcmp.lt.s32.totalorder %v1648, 4
    %v1671 = vsel %vm1667, %v1651, %v1654
    %v1672 = vsel %vm1670, %v1660, 2102212464
    %v1673 = vsel %vm1669, %v1657, %v1672
    %v1674 = vsel %vm1668, %v1671, %v1673
    %v1675 = vsel %vm1667, %v1654, %v1657
    %v1676 = vsel %vm1670, %v1663, 920167782
    %v1677 = vsel %vm1669, %v1660, %v1676
    %v1678 = vsel %vm1668, %v1675, %v1677
    %v1679 = vsel %vm1667, %v1657, %v1660
    %v1680 = vsel %vm1670, %v1666, 1326507024
    %v1681 = vsel %vm1669, %v1663, %v1680
    %v1682 = vsel %vm1668, %v1679, %v1681
    %v1683 = vshll.u32 %v1643, 8
    %v1684 = vmul.u32.u64.compose %v1683, %v1682
    %v1685 = vextract.low.u32 %v1684
    %v1686 = vextract.high.u32 %v1684
    %v1687 = vmul.u32.u64.compose %v1683, %v1678
    %v1688 = vextract.low.u32 %v1687
    %v1689 = vextract.high.u32 %v1687
    %v1690 = vmul.u32 %v1683, %v1674
    %v1691 = vadd.s32 %v1686, %v1688
    %vm1692 = vc.u32 %v1686, %v1688
    %v1693 = vadd.s32 %v1689, 1
    %v1694 = vsel %vm1692, %v1693, %v1689
    %v1695 = vadd.s32 %v1690, %v1694
    %v1696 = vadd.s32 %v1695, 536870912
    %v1697 = vshrl.u32 %v1696, 30
    %v1698 = vshll.u32 %v1697, 30
    %v1699 = vsub.s32 %v1695, %v1698
    %vm1700 = vcmp.lt.s32.totalorder %v1699, 0
    %v1701 = vsub.s32 0, %v1699
    %v1702 = vsel %vm1700, %v1701, %v1699
    %v1703 = vclz %v1702
    %v1704 = vsub.s32 %v1703, 2
    %vm1705 = vcmp.gt.s32.totalorder 0, %v1704
    %v1706 = vsel %vm1705, 0, %v1704
    %v1707 = vsub.s32 32, %v1706
    %v1708 = vshll.u32 %v1699, %v1706
    %v1709 = vshrl.u32 %v1691, %v1707
    %v1710 = vor.u32 %v1708, %v1709
    %v1711 = vsub.s32 4294967266, %v1706
    %v1712 = vadd.s32 %v1711, 127
    %v1713 = vshll.u32 %v1712, 23
    %v1714 = vor.u32 4788187, %v1713
    %v1715 = vand.u32 2147483647, %v1714
    %v1717 = vcvt.s32.f32 %v1710
    %v1718 = vmul.f32 %v1717, %v1715
    %v1719 = vxor.u32 %v1718, 2147483648
    %v1720 = vsel %vm1637, %v1719, %v1718
    %v1721 = vsub.s32 4, %v1697
    %v1722 = vsel %vm1637, %v1721, %v1697
    %v1723 = vsel %vm1636, %v74, %v1720
    %v1724 = vsel %vm1636, 0, %v1722
    %v1725 = vcosq.f32.pop %v1723
    %v1726 = vsinq.f32.pop %v1723
    %vm1727 = vweird.f32 %v74
    %v1728 = vadd.s32 %v1724, 3
    %v1729 = vand.u32 %v1728, 3
    %vm1730 = vcmp.lt.s32.totalorder %v1729, 2
    %vm1731 = vcmp.eq.s32.totalorder %v1729, 0
    %v1732 = vxor.u32 %v1726, 2147483648
    %v1733 = vsel %vm1731, %v1725, %v1732
    %vm1734 = vcmp.eq.s32.totalorder %v1729, 2
    %v1735 = vxor.u32 %v1725, 2147483648
    %v1736 = vsel %vm1734, %v1735, %v1726
    %v1737 = vsel %vm1730, %v1733, %v1736
    %v1738 = vsel %vm1727, nan, %v1737
    %1739 = vst [vmem:[#allocation2 + $0x8] sm:$0xff] %v1010
    %1740 = vst [vmem:[#allocation2 + $0x18] sm:$0xff] %v1114
    %1741 = vst [vmem:[#allocation2 + $0x28] sm:$0xff] %v1218
    %1742 = vst [vmem:[#allocation2 + $0x38] sm:$0xff] %v1322
    %1743 = vst [vmem:[#allocation2 + $0x48] sm:$0xff] %v1426
    %1744 = vst [vmem:[#allocation2 + $0x58] sm:$0xff] %v1530
    %1745 = vst [vmem:[#allocation2 + $0x68] sm:$0xff] %v1634
    %1746 = vst [vmem:[#allocation2 + $0x78] sm:$0xff] %v1738
    // Predicated region
    $region10: #{tpu_custom_call.1} parent=1 // pred_check
      _
    $region11: #{tpu_custom_call.1} parent=1 // pred_check_branch
      %1748 = sbr.rel (0) target = $region13
    $region12: #{tpu_custom_call.1} parent=1 // pred_region
      %s1750 = ssub.s32 2048, 2048
      %1751 = vsyncadd [#allocation3], %s1750
      %s1752 = sshll.u32 [#allocation2], 4
      %s1753 = int_to_ptr.vmem [resolvable:$true] %s1752
      %1758 = dma.vmem_to_hbm [thread:$0]  %s1753, 2048, %s2, [#allocation3], 256, 256, 16
    $region13: #{tpu_custom_call.1} parent=1 // pred_fallthru
      _
    // Predicated region
    $region14: #{tpu_custom_call.1} parent=1 // pred_check
      _
    $region15: #{tpu_custom_call.1} parent=1 // pred_check_branch
      %1760 = sbr.rel (0) target = $region17
    $region16: #{tpu_custom_call.1} parent=1 // pred_region
      %1761 = dma.done [#allocation3], 2048
    $region17: #{tpu_custom_call.1} parent=1 // pred_fallthru
      _
    %1762 = vsyncpa [#allocation3], 1

</llo_original>
